<compile_context>
chip_gen: v5e
topology: v5e:2x2
jax: 0.10.0
libtpu: 0.0.40
codegen_flags: <defaults>
</compile_context>

<pallas_src>
from functools import partial

import jax
import jax.numpy as jnp
import numpy as np
from jax.experimental import pallas as pl
from jax.experimental.pallas import tpu as pltpu

NUM_SAMPLE = 30
LAMB = 0.01


def mc_loss_kernel(lamb, inv_d, inv_e,
                   pca_ref, uni_ref, imgs_ref, eig_ref, avg_ref, gram_ref,
                   loss_ref, lh_ref):
    # pca_ref:  (1, TB, E)      per-image PCA activations (probabilities)
    # uni_ref:  (1, TB, S, E)   uniform draws for MC sampling
    # imgs_ref: (1, 2*TB, D)    rows [0:TB) = noisy images, [TB:2TB) = clean
    # eig_ref:  (D, E)          eigenvectors (constant block index -> fetched once)
    # avg_ref:  (1, D)          average face (shared)
    # gram_ref: (E, E)          G = eig^T @ eig (shared, precomputed in wrapper)
    # loss_ref: (1, TB, S)      per-sample losses
    # lh_ref:   (1, TB, S)      per-sample rescaled log-likelihoods
    pca = pca_ref[0]                                   # (TB, E)
    uni = uni_ref[0]                                   # (TB, S, E)
    tb = pca.shape[0]

    cen = imgs_ref[0] - avg_ref[...]                   # (2TB, D) centered [xn ; x]
    # Fused projection of noisy+clean images onto the eigenbasis (one matmul).
    proj = jnp.dot(cen, eig_ref[...],
                   preferred_element_type=jnp.float32)  # (2TB, E)
    c = proj[:tb]                                      # eig^T @ xn   (TB, E)
    cx = proj[tb:]                                     # eig^T @ x    (TB, E)
    x = cen[tb:]                                       # centered clean images (TB, D)
    x_sq = jnp.sum(x * x, axis=1, keepdims=True)       # (TB, 1)  ||x||^2

    pca_b = pca[:, None, :]                            # (TB, 1, E)
    samples = (pca_b > uni).astype(jnp.float32)        # (TB, S, E)  MC samples in {0,1}
    w = samples * c[:, None, :]                        # (TB, S, E)  w_s = s ⊙ (eig^T xn)

    # ||eig @ w_s||^2 = w_s^T G w_s, done as one (TB*S, E)@(E, E) matmul
    # (S is padded to a multiple of 8, so the reshape is layout-preserving).
    s, e = w.shape[1], w.shape[2]
    w_flat = w.reshape(tb * s, e)
    w_gram = jnp.dot(w_flat, gram_ref[...],
                     preferred_element_type=jnp.float32)          # (TB*S, E)
    quad = jnp.sum(w_gram.reshape(tb, s, e) * w, axis=2)          # (TB, S)
    cross = jnp.sum(w * cx[:, None, :], axis=2)                   # (TB, S) recon_s . x
    recon_loss = (quad - 2.0 * cross + x_sq) * inv_d              # mean over D pixels

    regular = jnp.sum(samples, axis=2)                            # (TB, S)
    loss = recon_loss + lamb * regular
    # torch Loss(): per-image, returns 0 if no eigenvector was sampled in ANY
    # of the S samples (the log-likelihood output is intentionally not gated).
    any_sampled = jnp.sum(regular, axis=1, keepdims=True) > 0.0   # (TB, 1)
    loss = jnp.where(any_sampled, loss, 0.0)

    # rescaled log-likelihood: mean over E of log(|1 - samples - pca| + 1)
    lh = jnp.sum(jnp.log(jnp.abs(1.0 - samples - pca_b) + 1.0), axis=2) * inv_e

    loss_ref[0] = loss
    lh_ref[0] = lh


def mc_loss_rescale(pca_act, images, images_noise, eig_vec, avg_face, uni_dis,
                    lamb=LAMB, num_sample=NUM_SAMPLE):
    """Returns (mc_loss, loss_mean), matching MCLoss_rescale.forward."""
    B, C, H, W = images.shape
    assert C == 1, "torch code requires single-channel images (image.view(1, H*W))"
    D = H * W
    E = pca_act.shape[1]
    S = num_sample
    assert uni_dis.shape == (B, S, E)

    # Pad the sample axis up to a sublane multiple; padded draws use uni=1.0
    # so pca > 1 is never true -> padded samples are all-zero and padded rows
    # are sliced away before the final reductions.
    S_pad = ((S + 7) // 8) * 8
    # Batch tile: a multiple of 8 so in-kernel row slices stay tile-aligned and
    # TB*S_pad fills the MXU M dimension (256 / 512 rows).
    TB = 8 if B <= 8 else 16
    NB = -(-B // TB)
    B_pad = NB * TB

    f32 = jnp.float32
    pca2 = jnp.pad(pca_act.astype(f32), ((0, B_pad - B), (0, 0)))
    uni = jnp.pad(uni_dis.astype(f32),
                  ((0, B_pad - B), (0, S_pad - S), (0, 0)),
                  constant_values=1.0)
    img2 = jnp.pad(images.reshape(B, D).astype(f32), ((0, B_pad - B), (0, 0)))
    imgn2 = jnp.pad(images_noise.reshape(B, D).astype(f32),
                    ((0, B_pad - B), (0, 0)))

    pca3 = pca2.reshape(NB, TB, E)
    uni4 = uni.reshape(NB, TB, S_pad, E)
    # noisy rows first, clean rows second -> one fused projection matmul
    imgs2 = jnp.concatenate(
        [imgn2.reshape(NB, TB, D), img2.reshape(NB, TB, D)], axis=1)  # (NB, 2TB, D)
    avg2 = avg_face.reshape(1, D).astype(f32)
    eig = eig_vec.astype(f32)
    gram = jnp.dot(eig.T, eig, precision=jax.lax.Precision.HIGHEST)   # (E, E)

    out_shapes = (jax.ShapeDtypeStruct((NB, TB, S_pad), f32),
                  jax.ShapeDtypeStruct((NB, TB, S_pad), f32))

    grid_spec = pltpu.PrefetchScalarGridSpec(
        num_scalar_prefetch=0,
        grid=(NB,),
        in_specs=[
            pl.BlockSpec((1, TB, E), lambda b: (b, 0, 0)),          # pca_act
            pl.BlockSpec((1, TB, S_pad, E), lambda b: (b, 0, 0, 0)),  # uniform draws
            pl.BlockSpec((1, 2 * TB, D), lambda b: (b, 0, 0)),      # stacked images
            pl.BlockSpec((D, E), lambda b: (0, 0)),                 # eig_vec (shared)
            pl.BlockSpec((1, D), lambda b: (0, 0)),                 # avg_face (shared)
            pl.BlockSpec((E, E), lambda b: (0, 0)),                 # Gram matrix (shared)
        ],
        out_specs=[
            pl.BlockSpec((1, TB, S_pad), lambda b: (b, 0, 0)),
            pl.BlockSpec((1, TB, S_pad), lambda b: (b, 0, 0)),
        ],
    )

    losses_b, lh_b = pl.pallas_call(
        partial(mc_loss_kernel, float(lamb), 1.0 / D, 1.0 / E),
        out_shape=out_shapes,
        grid_spec=grid_spec,
        compiler_params=pltpu.CompilerParams(
            dimension_semantics=("parallel",),       # v7x: 2 TCs split the batch
            vmem_limit_bytes=64 * 1024 * 1024),
    )(pca3, uni4, imgs2, eig, avg2, gram)

    losses = losses_b.reshape(B_pad, S_pad)[:B, :S].T      # (S, B) as in torch
    likehoods = lh_b.reshape(B_pad, S_pad)[:B, :S].T       # (S, B)
    loss_mean = losses.mean()
    mc_loss = (losses * likehoods).sum(0).mean()
    return mc_loss, loss_mean


def _reference(pca_act, images, images_noise, eig_vec, avg_face, uni_dis, lamb, S):
    """Float64 numpy reference mirroring the torch module (direct formulation)."""
    pca = np.asarray(pca_act, np.float64)
    B = images.shape[0]
    img = np.asarray(images, np.float64).reshape(B, -1)
    imgn = np.asarray(images_noise, np.float64).reshape(B, -1)
    eig = np.asarray(eig_vec, np.float64)
    avg = np.asarray(avg_face, np.float64)
    uni = np.asarray(uni_dis, np.float64)

    x = img - avg[None, :]
    xn = imgn - avg[None, :]
    samples = (pca[:, None, :] > uni).astype(np.float64)          # (B, S, E)
    c = xn @ eig                                                  # (B, E)
    recon = np.einsum('bse,de->bsd', samples * c[:, None, :], eig)
    recon_loss = ((recon - x[:, None, :]) ** 2).mean(axis=2)      # (B, S)
    regular = samples.sum(axis=2)
    loss = recon_loss + lamb * regular
    loss = np.where(samples.sum(axis=(1, 2))[:, None] > 0, loss, 0.0)
    lh = np.log(np.abs(1.0 - samples - pca[:, None, :]) + 1.0).mean(axis=2)
    losses = loss.T                                               # (S, B)
    lik = lh.T
    return (losses * lik).sum(0).mean(), losses.mean()


if __name__ == "__main__":
    B, E, H, W, S = 2, 32, 16, 16, NUM_SAMPLE
    D = H * W

    key = jax.random.PRNGKey(0)
    k_pca, k_img, k_noise, k_eig, k_avg, k_uni = jax.random.split(key, 6)

    # "parameters" of the module (normally torch.load(eigen_path)): built in-script
    eig_vec = jax.random.normal(k_eig, (D, E), dtype=jnp.float32) * 0.1
    avg_face = jax.random.normal(k_avg, (D,), dtype=jnp.float32) * 0.5

    # inputs implied by forward(): pca_act [B, E] in [0,1], images / noise [B, 1, H, W]
    pca_act = jax.random.uniform(k_pca, (B, E), dtype=jnp.float32)
    images = jax.random.normal(k_img, (B, 1, H, W), dtype=jnp.float32)
    images_noise = images + 0.05 * jax.random.normal(k_noise, (B, 1, H, W),
                                                     dtype=jnp.float32)

    # MC sampling randomness (torch.rand in MCSampling), generated deterministically here
    uni_dis = jax.random.uniform(k_uni, (B, S, E), dtype=jnp.float32)

    mc_loss, loss_mean = mc_loss_rescale(pca_act, images, images_noise,
                                         eig_vec, avg_face, uni_dis)
    jax.block_until_ready((mc_loss, loss_mean))

    mc_ref, mean_ref = _reference(pca_act, images, images_noise,
                                  eig_vec, avg_face, uni_dis, LAMB, S)
    np.testing.assert_allclose(np.asarray(mc_loss), mc_ref, rtol=2e-2, atol=2e-2)
    np.testing.assert_allclose(np.asarray(loss_mean), mean_ref, rtol=2e-2, atol=2e-2)
    print("KERNEL_OK")
</pallas_src>

<mosaic_0001>
module attributes {stable_mosaic.version = 11 : i64} {
  func.func @mc_loss_kernel(%arg0: i32, %arg1: memref<1x8x32xf32, #tpu.memory_space<vmem>>, %arg2: memref<1x8x32x32xf32, #tpu.memory_space<vmem>>, %arg3: memref<1x16x256xf32, #tpu.memory_space<vmem>>, %arg4: memref<256x32xf32, #tpu.memory_space<vmem>>, %arg5: memref<1x256xf32, #tpu.memory_space<vmem>>, %arg6: memref<32x32xf32, #tpu.memory_space<vmem>>, %arg7: memref<1x8x32xf32, #tpu.memory_space<vmem>>, %arg8: memref<1x8x32xf32, #tpu.memory_space<vmem>>) attributes {dimension_semantics = [#tpu.dimension_semantics<parallel>], iteration_bounds = array<i64: 1>, scalar_prefetch = 0 : i64, scratch_operands = 0 : i64, tpu.core_type = #tpu.core_type<tc>, window_params = [{transform_indices = @transform_0, window_bounds = array<i64: 1, 8, 32>}, {transform_indices = @transform_1, window_bounds = array<i64: 1, 8, 32, 32>}, {transform_indices = @transform_2, window_bounds = array<i64: 1, 16, 256>}, {pipeline_mode = #tpu.pipeline_mode<synchronous>, transform_indices = @transform_3, window_bounds = array<i64: 256, 32>}, {pipeline_mode = #tpu.pipeline_mode<synchronous>, transform_indices = @transform_4, window_bounds = array<i64: 1, 256>}, {pipeline_mode = #tpu.pipeline_mode<synchronous>, transform_indices = @transform_5, window_bounds = array<i64: 32, 32>}, {transform_indices = @transform_6, window_bounds = array<i64: 1, 8, 32>}, {transform_indices = @transform_7, window_bounds = array<i64: 1, 8, 32>}]} {
    %c0 = arith.constant 0 : index
    %c0_0 = arith.constant 0 : index
    %c0_1 = arith.constant 0 : index
    %0 = vector.load %arg1[%c0, %c0_0, %c0_1] : memref<1x8x32xf32, #tpu.memory_space<vmem>>, vector<1x8x32xf32>
    %1 = vector.shape_cast %0 : vector<1x8x32xf32> to vector<8x32xf32>
    %c0_2 = arith.constant 0 : index
    %c0_3 = arith.constant 0 : index
    %c0_4 = arith.constant 0 : index
    %c0_5 = arith.constant 0 : index
    %2 = vector.load %arg2[%c0_2, %c0_3, %c0_4, %c0_5] : memref<1x8x32x32xf32, #tpu.memory_space<vmem>>, vector<1x8x32x32xf32>
    %3 = vector.shape_cast %2 : vector<1x8x32x32xf32> to vector<8x32x32xf32>
    %c0_6 = arith.constant 0 : index
    %c0_7 = arith.constant 0 : index
    %c0_8 = arith.constant 0 : index
    %4 = vector.load %arg3[%c0_6, %c0_7, %c0_8] : memref<1x16x256xf32, #tpu.memory_space<vmem>>, vector<1x16x256xf32>
    %5 = vector.shape_cast %4 : vector<1x16x256xf32> to vector<16x256xf32>
    %c0_9 = arith.constant 0 : index
    %c0_10 = arith.constant 0 : index
    %6 = vector.load %arg5[%c0_9, %c0_10] : memref<1x256xf32, #tpu.memory_space<vmem>>, vector<1x256xf32>
    %7 = vector.broadcast %6 : vector<1x256xf32> to vector<16x256xf32>
    %8 = arith.subf %5, %7 : vector<16x256xf32>
    %c0_11 = arith.constant 0 : index
    %c0_12 = arith.constant 0 : index
    %9 = vector.load %arg4[%c0_11, %c0_12] : memref<256x32xf32, #tpu.memory_space<vmem>>, vector<256x32xf32>
    %cst = arith.constant dense<0.000000e+00> : vector<16x32xf32>
    %10 = tpu.matmul %8, %9, %cst {dimension_numbers = #tpu.dot_dimension_numbers<[1], [0], [0], [1], [0, 0, 1, 1], [], []>} : vector<16x256xf32>, vector<256x32xf32>, vector<16x32xf32> -> vector<16x32xf32>
    %11 = vector.extract_strided_slice %10 {offsets = [0, 0], sizes = [8, 32], strides = [1, 1]} : vector<16x32xf32> to vector<8x32xf32>
    %12 = vector.extract_strided_slice %10 {offsets = [8, 0], sizes = [8, 32], strides = [1, 1]} : vector<16x32xf32> to vector<8x32xf32>
    %13 = vector.extract_strided_slice %8 {offsets = [8, 0], sizes = [8, 256], strides = [1, 1]} : vector<16x256xf32> to vector<8x256xf32>
    %14 = arith.mulf %13, %13 : vector<8x256xf32>
    %cst_13 = arith.constant dense<0.000000e+00> : vector<8xf32>
    %15 = vector.multi_reduction <add>, %14, %cst_13 [1] : vector<8x256xf32> to vector<8xf32>
    %16 = vector.shape_cast %15 : vector<8xf32> to vector<8x1xf32>
    %17 = vector.shape_cast %1 : vector<8x32xf32> to vector<8x1x32xf32>
    %18 = vector.broadcast %17 : vector<8x1x32xf32> to vector<8x32x32xf32>
    %19 = arith.cmpf ogt, %18, %3 : vector<8x32x32xf32>
    %20 = arith.extui %19 : vector<8x32x32xi1> to vector<8x32x32xi32>
    %21 = arith.sitofp %20 : vector<8x32x32xi32> to vector<8x32x32xf32>
    %22 = vector.shape_cast %11 : vector<8x32xf32> to vector<8x1x32xf32>
    %23 = vector.broadcast %22 : vector<8x1x32xf32> to vector<8x32x32xf32>
    %24 = arith.mulf %21, %23 : vector<8x32x32xf32>
    %25 = vector.shape_cast %24 : vector<8x32x32xf32> to vector<256x32xf32>
    %c0_14 = arith.constant 0 : index
    %c0_15 = arith.constant 0 : index
    %26 = vector.load %arg6[%c0_14, %c0_15] : memref<32x32xf32, #tpu.memory_space<vmem>>, vector<32x32xf32>
    %cst_16 = arith.constant dense<0.000000e+00> : vector<256x32xf32>
    %27 = tpu.matmul %25, %26, %cst_16 {dimension_numbers = #tpu.dot_dimension_numbers<[1], [0], [0], [1], [0, 0, 1, 1], [], []>} : vector<256x32xf32>, vector<32x32xf32>, vector<256x32xf32> -> vector<256x32xf32>
    %28 = vector.shape_cast %27 : vector<256x32xf32> to vector<8x32x32xf32>
    %29 = arith.mulf %28, %24 : vector<8x32x32xf32>
    %cst_17 = arith.constant dense<0.000000e+00> : vector<8x32xf32>
    %30 = vector.multi_reduction <add>, %29, %cst_17 [2] : vector<8x32x32xf32> to vector<8x32xf32>
    %31 = vector.shape_cast %12 : vector<8x32xf32> to vector<8x1x32xf32>
    %32 = vector.broadcast %31 : vector<8x1x32xf32> to vector<8x32x32xf32>
    %33 = arith.mulf %24, %32 : vector<8x32x32xf32>
    %cst_18 = arith.constant dense<0.000000e+00> : vector<8x32xf32>
    %34 = vector.multi_reduction <add>, %33, %cst_18 [2] : vector<8x32x32xf32> to vector<8x32xf32>
    %cst_19 = arith.constant 2.000000e+00 : f32
    %35 = vector.broadcast %cst_19 : f32 to vector<8x32xf32>
    %36 = arith.mulf %35, %34 : vector<8x32xf32>
    %37 = arith.subf %30, %36 : vector<8x32xf32>
    %38 = vector.broadcast %16 : vector<8x1xf32> to vector<8x32xf32>
    %39 = arith.addf %37, %38 : vector<8x32xf32>
    %cst_20 = arith.constant 3.906250e-03 : f32
    %40 = vector.broadcast %cst_20 : f32 to vector<8x32xf32>
    %41 = arith.mulf %39, %40 : vector<8x32xf32>
    %cst_21 = arith.constant dense<0.000000e+00> : vector<8x32xf32>
    %42 = vector.multi_reduction <add>, %21, %cst_21 [2] : vector<8x32x32xf32> to vector<8x32xf32>
    %cst_22 = arith.constant 0.00999999977 : f32
    %43 = vector.broadcast %cst_22 : f32 to vector<8x32xf32>
    %44 = arith.mulf %43, %42 : vector<8x32xf32>
    %45 = arith.addf %41, %44 : vector<8x32xf32>
    %cst_23 = arith.constant dense<0.000000e+00> : vector<8xf32>
    %46 = vector.multi_reduction <add>, %42, %cst_23 [1] : vector<8x32xf32> to vector<8xf32>
    %47 = vector.shape_cast %46 : vector<8xf32> to vector<8x1xf32>
    %cst_24 = arith.constant 0.000000e+00 : f32
    %48 = vector.broadcast %cst_24 : f32 to vector<8x1xf32>
    %49 = arith.cmpf ogt, %47, %48 : vector<8x1xf32>
    %cst_25 = arith.constant 0.000000e+00 : f32
    %50 = vector.shape_cast %49 : vector<8x1xi1> to vector<8x1xi1>
    %51 = vector.broadcast %50 : vector<8x1xi1> to vector<8x32xi1>
    %52 = vector.broadcast %cst_25 : f32 to vector<8x32xf32>
    %53 = arith.select %51, %45, %52 : vector<8x32xi1>, vector<8x32xf32>
    %cst_26 = arith.constant 1.000000e+00 : f32
    %54 = vector.broadcast %cst_26 : f32 to vector<8x32x32xf32>
    %55 = arith.subf %54, %21 : vector<8x32x32xf32>
    %56 = vector.broadcast %17 : vector<8x1x32xf32> to vector<8x32x32xf32>
    %57 = arith.subf %55, %56 : vector<8x32x32xf32>
    %58 = math.absf %57 : vector<8x32x32xf32>
    %cst_27 = arith.constant 1.000000e+00 : f32
    %59 = vector.broadcast %cst_27 : f32 to vector<8x32x32xf32>
    %60 = arith.addf %58, %59 : vector<8x32x32xf32>
    %61 = math.log %60 : vector<8x32x32xf32>
    %cst_28 = arith.constant dense<0.000000e+00> : vector<8x32xf32>
    %62 = vector.multi_reduction <add>, %61, %cst_28 [2] : vector<8x32x32xf32> to vector<8x32xf32>
    %cst_29 = arith.constant 3.125000e-02 : f32
    %63 = vector.broadcast %cst_29 : f32 to vector<8x32xf32>
    %64 = arith.mulf %62, %63 : vector<8x32xf32>
    %c0_30 = arith.constant 0 : index
    %c0_31 = arith.constant 0 : index
    %c0_32 = arith.constant 0 : index
    %65 = vector.load %arg7[%c0_30, %c0_31, %c0_32] : memref<1x8x32xf32, #tpu.memory_space<vmem>>, vector<1x8x32xf32>
    %66 = vector.shape_cast %65 : vector<1x8x32xf32> to vector<8x32xf32>
    %67 = vector.shape_cast %53 : vector<8x32xf32> to vector<1x8x32xf32>
    tpu.vector_store %arg7[%c0_30, %c0_31, %c0_32], %67 {strides = array<i32>} : memref<1x8x32xf32, #tpu.memory_space<vmem>>, vector<1x8x32xf32>,
    %c0_33 = arith.constant 0 : index
    %c0_34 = arith.constant 0 : index
    %c0_35 = arith.constant 0 : index
    %68 = vector.load %arg8[%c0_33, %c0_34, %c0_35] : memref<1x8x32xf32, #tpu.memory_space<vmem>>, vector<1x8x32xf32>
    %69 = vector.shape_cast %68 : vector<1x8x32xf32> to vector<8x32xf32>
    %70 = vector.shape_cast %64 : vector<8x32xf32> to vector<1x8x32xf32>
    tpu.vector_store %arg8[%c0_33, %c0_34, %c0_35], %70 {strides = array<i32>} : memref<1x8x32xf32, #tpu.memory_space<vmem>>, vector<1x8x32xf32>,
    return
  }
  func.func @transform_0(%arg0: i32) -> (i32, i32, i32) {
    %c0_i32 = arith.constant 0 : i32
    %c0_i32_0 = arith.constant 0 : i32
    %c0_i32_1 = arith.constant 0 : i32
    return %arg0, %c0_i32, %c0_i32_0 : i32, i32, i32
  }
  func.func @transform_1(%arg0: i32) -> (i32, i32, i32, i32) {
    %c0_i32 = arith.constant 0 : i32
    %c0_i32_0 = arith.constant 0 : i32
    %c0_i32_1 = arith.constant 0 : i32
    %c0_i32_2 = arith.constant 0 : i32
    return %arg0, %c0_i32, %c0_i32_0, %c0_i32_1 : i32, i32, i32, i32
  }
  func.func @transform_2(%arg0: i32) -> (i32, i32, i32) {
    %c0_i32 = arith.constant 0 : i32
    %c0_i32_0 = arith.constant 0 : i32
    %c0_i32_1 = arith.constant 0 : i32
    return %arg0, %c0_i32, %c0_i32_0 : i32, i32, i32
  }
  func.func @transform_3(%arg0: i32) -> (i32, i32) {
    %c0_i32 = arith.constant 0 : i32
    %c0_i32_0 = arith.constant 0 : i32
    %c0_i32_1 = arith.constant 0 : i32
    return %c0_i32, %c0_i32_0 : i32, i32
  }
  func.func @transform_4(%arg0: i32) -> (i32, i32) {
    %c0_i32 = arith.constant 0 : i32
    %c0_i32_0 = arith.constant 0 : i32
    %c0_i32_1 = arith.constant 0 : i32
    return %c0_i32, %c0_i32_0 : i32, i32
  }
  func.func @transform_5(%arg0: i32) -> (i32, i32) {
    %c0_i32 = arith.constant 0 : i32
    %c0_i32_0 = arith.constant 0 : i32
    %c0_i32_1 = arith.constant 0 : i32
    return %c0_i32, %c0_i32_0 : i32, i32
  }
  func.func @transform_6(%arg0: i32) -> (i32, i32, i32) {
    %c0_i32 = arith.constant 0 : i32
    %c0_i32_0 = arith.constant 0 : i32
    %c0_i32_1 = arith.constant 0 : i32
    return %arg0, %c0_i32, %c0_i32_0 : i32, i32, i32
  }
  func.func @transform_7(%arg0: i32) -> (i32, i32, i32) {
    %c0_i32 = arith.constant 0 : i32
    %c0_i32_0 = arith.constant 0 : i32
    %c0_i32_1 = arith.constant 0 : i32
    return %arg0, %c0_i32, %c0_i32_0 : i32, i32, i32
  }
}

</mosaic_0001>

<llo_original>
// kernel: tpu_custom_call.1
$region0: #{tpu_custom_call.1}
  #allocation0 [shape = 'u32[]', space=smem, size = 0x4, offset = 0x4, fixed_abs, tag = 'smem constant byte address 0x4 - core index']
  #allocation1 [shape = 'u32[72,128]{1,0:T(1,128)}', space=vmem, size = 0x9000, scoped, tag = 'internal scratch']
  %s0 = inlined_call_operand.hbm [shape: f32[1,8,32], index: 0, kind: input, shape index: {}]
  %s1 = inlined_call_operand.vmem [shape: f32[1,8,32,32], index: 1, kind: input, shape index: {}]
  %s2 = inlined_call_operand.vmem [shape: f32[1,16,256], index: 2, kind: input, shape index: {}]
  %s3 = inlined_call_operand.vmem [shape: f32[256,32], index: 3, kind: input, shape index: {}]
  %s4 = inlined_call_operand.vmem [shape: f32[1,256], index: 4, kind: input, shape index: {}]
  %s5 = inlined_call_operand.vmem [shape: f32[32,32], index: 5, kind: input, shape index: {}]
  %s6 = inlined_call_operand.hbm [shape: f32[1,8,32], index: 6, kind: output, shape index: {0}]
  %s7 = inlined_call_operand.hbm [shape: f32[1,8,32], index: 7, kind: output, shape index: {1}]
  %8 = xla_tuple %s6, %s7
  %s9 = sld [smem:[#allocation0]]
  $region46: #{tpu_custom_call.1} parent=0
    _
  %s11 = ssub.s32 1, %s9
  %s12 = scalar_select 0, %s11, %s9
  $region1: #{tpu_custom_call.1} parent=0
    #allocation2 [shape = 'u8[4096]{0}', space=vmem, size = 0x1000, scoped, tag = 'input window, operand 0, single buffered']
    #allocation3 [shape = 's32[1]{0}', space=sflag, size = 0x4, scoped, tag = 'scoped memory for tpu_custom_call.1']
    #allocation4 [shape = 's32[1]{0}', space=sflag, size = 0x4, scoped, tag = 'scoped memory for tpu_custom_call.1']
    #allocation5 [shape = 'u8[4096]{0}', space=vmem, size = 0x1000, scoped, tag = 'output window, operand 0, single buffered']
    #allocation6 [shape = 'u8[4096]{0}', space=vmem, size = 0x1000, scoped, tag = 'output window, operand 1, single buffered']
    #allocation7 [shape = 's32[1]{0}', space=sflag, size = 0x4, scoped, tag = 'scoped memory for tpu_custom_call.1']
    %13 = vsyncpa [#allocation3], 0
    %14 = vsyncpa [#allocation4], 0
    %15 = vsyncpa [#allocation7], 0
    // Predicated region
    $region2: #{tpu_custom_call.1} parent=1 // pred_check
      _
    $region3: #{tpu_custom_call.1} parent=1 // pred_check_branch
      %17 = sbr.rel (0) target = $region5
    $region4: #{tpu_custom_call.1} parent=1 // pred_region
      %19 = vsyncadd [#allocation3], 0
      %s21 = sshll.u32 %s0, 4
      %s22 = int_to_ptr.hbm [resolvable:$true] %s21
      %s23 = sshll.u32 [#allocation2], 4
      %s24 = int_to_ptr.vmem [resolvable:$true] %s23
      %26 = dma.hbm_to_vmem [thread:$0]  %s22, 128, %s24, [#allocation3]
    $region5: #{tpu_custom_call.1} parent=1 // pred_fallthru
      _
    // Predicated region
    $region6: #{tpu_custom_call.1} parent=1 // pred_check
      _
    $region7: #{tpu_custom_call.1} parent=1 // pred_check_branch
      %28 = sbr.rel (0) target = $region9
    $region8: #{tpu_custom_call.1} parent=1 // pred_region
      _
    $region9: #{tpu_custom_call.1} parent=1 // pred_fallthru
      _
    // Predicated region
    $region10: #{tpu_custom_call.1} parent=1 // pred_check
      _
    $region11: #{tpu_custom_call.1} parent=1 // pred_check_branch
      %30 = sbr.rel (0) target = $region13
    $region12: #{tpu_custom_call.1} parent=1 // pred_region
      _
    $region13: #{tpu_custom_call.1} parent=1 // pred_fallthru
      _
    // Predicated region
    $region14: #{tpu_custom_call.1} parent=1 // pred_check
      _
    $region15: #{tpu_custom_call.1} parent=1 // pred_check_branch
      %32 = sbr.rel (0) target = $region17
    $region16: #{tpu_custom_call.1} parent=1 // pred_region
      _
    $region17: #{tpu_custom_call.1} parent=1 // pred_fallthru
      _
    // Predicated region
    $region18: #{tpu_custom_call.1} parent=1 // pred_check
      _
    $region19: #{tpu_custom_call.1} parent=1 // pred_check_branch
      %34 = sbr.rel (0) target = $region21
    $region20: #{tpu_custom_call.1} parent=1 // pred_region
      _
    $region21: #{tpu_custom_call.1} parent=1 // pred_fallthru
      _
    // Predicated region
    $region22: #{tpu_custom_call.1} parent=1 // pred_check
      _
    $region23: #{tpu_custom_call.1} parent=1 // pred_check_branch
      %36 = sbr.rel (0) target = $region25
    $region24: #{tpu_custom_call.1} parent=1 // pred_region
      _
    $region25: #{tpu_custom_call.1} parent=1 // pred_fallthru
      _
    // Predicated region
    $region26: #{tpu_custom_call.1} parent=1 // pred_check
      _
    $region27: #{tpu_custom_call.1} parent=1 // pred_check_branch
      %38 = sbr.rel (0) target = $region29
    $region28: #{tpu_custom_call.1} parent=1 // pred_region
      %40 = dma.done [#allocation3], 128
    $region29: #{tpu_custom_call.1} parent=1 // pred_fallthru
      _
    %v41 = vld [vmem:[#allocation2] sm:$0xff]
    %v42 = vld [vmem:[%s1] sm:$0xff]
    %v43 = vld [vmem:[%s1 + $0x8] sm:$0xff]
    %v44 = vld [vmem:[%s1 + $0x10] sm:$0xff]
    %v45 = vld [vmem:[%s1 + $0x18] sm:$0xff]
    %v46 = vld [vmem:[%s1 + $0x20] sm:$0xff]
    %v47 = vld [vmem:[%s1 + $0x28] sm:$0xff]
    %v48 = vld [vmem:[%s1 + $0x30] sm:$0xff]
    %v49 = vld [vmem:[%s1 + $0x38] sm:$0xff]
    %v50 = vld [vmem:[%s1 + $0x40] sm:$0xff]
    %v51 = vld [vmem:[%s1 + $0x48] sm:$0xff]
    %v52 = vld [vmem:[%s1 + $0x50] sm:$0xff]
    %v53 = vld [vmem:[%s1 + $0x58] sm:$0xff]
    %v54 = vld [vmem:[%s1 + $0x60] sm:$0xff]
    %v55 = vld [vmem:[%s1 + $0x68] sm:$0xff]
    %v56 = vld [vmem:[%s1 + $0x70] sm:$0xff]
    %v57 = vld [vmem:[%s1 + $0x78] sm:$0xff]
    %v58 = vld [vmem:[%s1 + $0x80] sm:$0xff]
    %v59 = vld [vmem:[%s1 + $0x88] sm:$0xff]
    %v60 = vld [vmem:[%s1 + $0x90] sm:$0xff]
    %v61 = vld [vmem:[%s1 + $0x98] sm:$0xff]
    %v62 = vld [vmem:[%s1 + $0xa0] sm:$0xff]
    %v63 = vld [vmem:[%s1 + $0xa8] sm:$0xff]
    %v64 = vld [vmem:[%s1 + $0xb0] sm:$0xff]
    %v65 = vld [vmem:[%s1 + $0xb8] sm:$0xff]
    %v66 = vld [vmem:[%s1 + $0xc0] sm:$0xff]
    %v67 = vld [vmem:[%s1 + $0xc8] sm:$0xff]
    %v68 = vld [vmem:[%s1 + $0xd0] sm:$0xff]
    %v69 = vld [vmem:[%s1 + $0xd8] sm:$0xff]
    %v70 = vld [vmem:[%s1 + $0xe0] sm:$0xff]
    %v71 = vld [vmem:[%s1 + $0xe8] sm:$0xff]
    %v72 = vld [vmem:[%s1 + $0xf0] sm:$0xff]
    %v73 = vld [vmem:[%s1 + $0xf8] sm:$0xff]
    %v74 = vld [vmem:[%s2] sm:$0xff]
    %v75 = vld [vmem:[%s2 + $0x8] sm:$0xff]
    %v76 = vld [vmem:[%s2 + $0x10] sm:$0xff]
    %v77 = vld [vmem:[%s2 + $0x18] sm:$0xff]
    %v78 = vld [vmem:[%s4] sm:$0x3]
    %v80 = vperm.slane %v78, 0
    %v81 = vperm.slane %v78, 1
    %v84 = vsub.f32 %v74, %v80
    %v85 = vsub.f32 %v75, %v81
    %v86 = vsub.f32 %v76, %v80
    %v87 = vsub.f32 %v77, %v81
    %v88 = vld [vmem:[%s3] sm:$0xff]
    %v89 = vld [vmem:[%s3 + $0x8] sm:$0xff]
    %v90 = vld [vmem:[%s3 + $0x10] sm:$0xff]
    %v91 = vld [vmem:[%s3 + $0x18] sm:$0xff]
    %v92 = vld [vmem:[%s3 + $0x20] sm:$0xff]
    %v93 = vld [vmem:[%s3 + $0x28] sm:$0xff]
    %v94 = vld [vmem:[%s3 + $0x30] sm:$0xff]
    %v95 = vld [vmem:[%s3 + $0x38] sm:$0xff]
    %v96 = vld [vmem:[%s3 + $0x40] sm:$0xff]
    %v97 = vld [vmem:[%s3 + $0x48] sm:$0xff]
    %v98 = vld [vmem:[%s3 + $0x50] sm:$0xff]
    %v99 = vld [vmem:[%s3 + $0x58] sm:$0xff]
    %v100 = vld [vmem:[%s3 + $0x60] sm:$0xff]
    %v101 = vld [vmem:[%s3 + $0x68] sm:$0xff]
    %v102 = vld [vmem:[%s3 + $0x70] sm:$0xff]
    %v103 = vld [vmem:[%s3 + $0x78] sm:$0xff]
    %v104 = vld [vmem:[%s3 + $0x80] sm:$0xff]
    %v105 = vld [vmem:[%s3 + $0x88] sm:$0xff]
    %v106 = vld [vmem:[%s3 + $0x90] sm:$0xff]
    %v107 = vld [vmem:[%s3 + $0x98] sm:$0xff]
    %v108 = vld [vmem:[%s3 + $0xa0] sm:$0xff]
    %v109 = vld [vmem:[%s3 + $0xa8] sm:$0xff]
    %v110 = vld [vmem:[%s3 + $0xb0] sm:$0xff]
    %v111 = vld [vmem:[%s3 + $0xb8] sm:$0xff]
    %v112 = vld [vmem:[%s3 + $0xc0] sm:$0xff]
    %v113 = vld [vmem:[%s3 + $0xc8] sm:$0xff]
    %v114 = vld [vmem:[%s3 + $0xd0] sm:$0xff]
    %v115 = vld [vmem:[%s3 + $0xd8] sm:$0xff]
    %v116 = vld [vmem:[%s3 + $0xe0] sm:$0xff]
    %v117 = vld [vmem:[%s3 + $0xe8] sm:$0xff]
    %v118 = vld [vmem:[%s3 + $0xf0] sm:$0xff]
    %v119 = vld [vmem:[%s3 + $0xf8] sm:$0xff]
    %120 = vmatpush.msra.mxu0 %v103
    %121 = vmatpush.msra.mxu0 %v102
    %122 = vmatpush.msra.mxu0 %v101
    %123 = vmatpush.msra.mxu0 %v100
    %124 = vmatpush.msra.mxu0 %v99
    %125 = vmatpush.msra.mxu0 %v98
    %126 = vmatpush.msra.mxu0 %v97
    %127 = vmatpush.msra.mxu0 %v96
    %128 = vmatpush.msra.mxu0 %v95
    %129 = vmatpush.msra.mxu0 %v94
    %130 = vmatpush.msra.mxu0 %v93
    %131 = vmatpush.msra.mxu0 %v92
    %132 = vmatpush.msra.mxu0 %v91
    %133 = vmatpush.msra.mxu0 %v90
    %134 = vmatpush.msra.mxu0 %v89
    %135 = vmatpush.msra.mxu0 %v88
    %136 = vmatmul.f32.gmra.mxu0 %v84
    %v137 = vpop.f32.mrf.mxu0
    %v138 = vadd.f32 0.0, %v137
    %139 = vmatmul.f32.gmra.mxu0 %v86
    %v140 = vpop.f32.mrf.mxu0
    %v141 = vadd.f32 0.0, %v140
    %142 = vdwg.mxu0
    %143 = vmatpush.msra.mxu0 %v119
    %144 = vmatpush.msra.mxu0 %v118
    %145 = vmatpush.msra.mxu0 %v117
    %146 = vmatpush.msra.mxu0 %v116
    %147 = vmatpush.msra.mxu0 %v115
    %148 = vmatpush.msra.mxu0 %v114
    %149 = vmatpush.msra.mxu0 %v113
    %150 = vmatpush.msra.mxu0 %v112
    %151 = vmatpush.msra.mxu0 %v111
    %152 = vmatpush.msra.mxu0 %v110
    %153 = vmatpush.msra.mxu0 %v109
    %154 = vmatpush.msra.mxu0 %v108
    %155 = vmatpush.msra.mxu0 %v107
    %156 = vmatpush.msra.mxu0 %v106
    %157 = vmatpush.msra.mxu0 %v105
    %158 = vmatpush.msra.mxu0 %v104
    %159 = vmatmul.f32.gmra.mxu0 %v85
    %v160 = vpop.f32.mrf.mxu0
    %v161 = vadd.f32 %v138, %v160
    %162 = vmatmul.f32.gmra.mxu0 %v87
    %v163 = vpop.f32.mrf.mxu0
    %v164 = vadd.f32 %v141, %v163
    %165 = vdwg.mxu0
    %v166 = vmul.f32 %v86, %v86
    %v167 = vmul.f32 %v87, %v87
    %v168 = vadd.f32 %v166, %v167
    %169 = vadd.xlane.f32.xlu0 %v168
    %v170 = vpop.xlane.xlu0 %169
    %v172 = vrot.slane %v41, 1
    %v173 = vrot.slane %v41, 2
    %v174 = vrot.slane %v41, 3
    %v175 = vrot.slane %v41, 4
    %v176 = vrot.slane %v41, 5
    %v177 = vrot.slane %v41, 6
    %v178 = vrot.slane %v41, 7
    %v179 = vperm.slane %v41, 0
    %v180 = vperm.slane %v172, 0
    %v181 = vperm.slane %v173, 0
    %v182 = vperm.slane %v174, 0
    %v183 = vperm.slane %v175, 0
    %v184 = vperm.slane %v176, 0
    %v185 = vperm.slane %v177, 0
    %v186 = vperm.slane %v178, 0
    %vm195 = vcmp.gt.f32.partialorder %v179, %v42
    %vm196 = vcmp.gt.f32.partialorder %v179, %v43
    %vm197 = vcmp.gt.f32.partialorder %v179, %v44
    %vm198 = vcmp.gt.f32.partialorder %v179, %v45
    %vm199 = vcmp.gt.f32.partialorder %v180, %v46
    %vm200 = vcmp.gt.f32.partialorder %v180, %v47
    %vm201 = vcmp.gt.f32.partialorder %v180, %v48
    %vm202 = vcmp.gt.f32.partialorder %v180, %v49
    %vm203 = vcmp.gt.f32.partialorder %v181, %v50
    %vm204 = vcmp.gt.f32.partialorder %v181, %v51
    %vm205 = vcmp.gt.f32.partialorder %v181, %v52
    %vm206 = vcmp.gt.f32.partialorder %v181, %v53
    %vm207 = vcmp.gt.f32.partialorder %v182, %v54
    %vm208 = vcmp.gt.f32.partialorder %v182, %v55
    %vm209 = vcmp.gt.f32.partialorder %v182, %v56
    %vm210 = vcmp.gt.f32.partialorder %v182, %v57
    %vm211 = vcmp.gt.f32.partialorder %v183, %v58
    %vm212 = vcmp.gt.f32.partialorder %v183, %v59
    %vm213 = vcmp.gt.f32.partialorder %v183, %v60
    %vm214 = vcmp.gt.f32.partialorder %v183, %v61
    %vm215 = vcmp.gt.f32.partialorder %v184, %v62
    %vm216 = vcmp.gt.f32.partialorder %v184, %v63
    %vm217 = vcmp.gt.f32.partialorder %v184, %v64
    %vm218 = vcmp.gt.f32.partialorder %v184, %v65
    %vm219 = vcmp.gt.f32.partialorder %v185, %v66
    %vm220 = vcmp.gt.f32.partialorder %v185, %v67
    %vm221 = vcmp.gt.f32.partialorder %v185, %v68
    %vm222 = vcmp.gt.f32.partialorder %v185, %v69
    %vm223 = vcmp.gt.f32.partialorder %v186, %v70
    %vm224 = vcmp.gt.f32.partialorder %v186, %v71
    %vm225 = vcmp.gt.f32.partialorder %v186, %v72
    %vm226 = vcmp.gt.f32.partialorder %v186, %v73
    %v227 = vsel %vm195, 1, 0
    %v228 = vsel %vm196, 1, 0
    %v229 = vsel %vm197, 1, 0
    %v230 = vsel %vm198, 1, 0
    %v231 = vsel %vm199, 1, 0
    %v232 = vsel %vm200, 1, 0
    %v233 = vsel %vm201, 1, 0
    %v234 = vsel %vm202, 1, 0
    %v235 = vsel %vm203, 1, 0
    %v236 = vsel %vm204, 1, 0
    %v237 = vsel %vm205, 1, 0
    %v238 = vsel %vm206, 1, 0
    %v239 = vsel %vm207, 1, 0
    %v240 = vsel %vm208, 1, 0
    %v241 = vsel %vm209, 1, 0
    %v242 = vsel %vm210, 1, 0
    %v243 = vsel %vm211, 1, 0
    %v244 = vsel %vm212, 1, 0
    %v245 = vsel %vm213, 1, 0
    %v246 = vsel %vm214, 1, 0
    %v247 = vsel %vm215, 1, 0
    %v248 = vsel %vm216, 1, 0
    %v249 = vsel %vm217, 1, 0
    %v250 = vsel %vm218, 1, 0
    %v251 = vsel %vm219, 1, 0
    %v252 = vsel %vm220, 1, 0
    %v253 = vsel %vm221, 1, 0
    %v254 = vsel %vm222, 1, 0
    %v255 = vsel %vm223, 1, 0
    %v256 = vsel %vm224, 1, 0
    %v257 = vsel %vm225, 1, 0
    %v258 = vsel %vm226, 1, 0
    %v259 = vcvt.s32.f32 %v227
    %v260 = vcvt.s32.f32 %v228
    %v261 = vcvt.s32.f32 %v229
    %v262 = vcvt.s32.f32 %v230
    %v263 = vcvt.s32.f32 %v231
    %v264 = vcvt.s32.f32 %v232
    %v265 = vcvt.s32.f32 %v233
    %v266 = vcvt.s32.f32 %v234
    %v267 = vcvt.s32.f32 %v235
    %v268 = vcvt.s32.f32 %v236
    %v269 = vcvt.s32.f32 %v237
    %v270 = vcvt.s32.f32 %v238
    %v271 = vcvt.s32.f32 %v239
    %v272 = vcvt.s32.f32 %v240
    %v273 = vcvt.s32.f32 %v241
    %v274 = vcvt.s32.f32 %v242
    %v275 = vcvt.s32.f32 %v243
    %v276 = vcvt.s32.f32 %v244
    %v277 = vcvt.s32.f32 %v245
    %v278 = vcvt.s32.f32 %v246
    %v279 = vcvt.s32.f32 %v247
    %v280 = vcvt.s32.f32 %v248
    %v281 = vcvt.s32.f32 %v249
    %v282 = vcvt.s32.f32 %v250
    %v283 = vcvt.s32.f32 %v251
    %v284 = vcvt.s32.f32 %v252
    %v285 = vcvt.s32.f32 %v253
    %v286 = vcvt.s32.f32 %v254
    %v287 = vcvt.s32.f32 %v255
    %v288 = vcvt.s32.f32 %v256
    %v289 = vcvt.s32.f32 %v257
    %v290 = vcvt.s32.f32 %v258
    %v292 = vrot.slane %v161, 1
    %v293 = vrot.slane %v161, 2
    %v294 = vrot.slane %v161, 3
    %v295 = vrot.slane %v161, 4
    %v296 = vrot.slane %v161, 5
    %v297 = vrot.slane %v161, 6
    %v298 = vrot.slane %v161, 7
    %v299 = vperm.slane %v161, 0
    %v300 = vperm.slane %v292, 0
    %v301 = vperm.slane %v293, 0
    %v302 = vperm.slane %v294, 0
    %v303 = vperm.slane %v295, 0
    %v304 = vperm.slane %v296, 0
    %v305 = vperm.slane %v297, 0
    %v306 = vperm.slane %v298, 0
    %v315 = vmul.f32 %v259, %v299
    %v316 = vmul.f32 %v260, %v299
    %v317 = vmul.f32 %v261, %v299
    %v318 = vmul.f32 %v262, %v299
    %v319 = vmul.f32 %v263, %v300
    %v320 = vmul.f32 %v264, %v300
    %v321 = vmul.f32 %v265, %v300
    %v322 = vmul.f32 %v266, %v300
    %v323 = vmul.f32 %v267, %v301
    %v324 = vmul.f32 %v268, %v301
    %v325 = vmul.f32 %v269, %v301
    %v326 = vmul.f32 %v270, %v301
    %v327 = vmul.f32 %v271, %v302
    %v328 = vmul.f32 %v272, %v302
    %v329 = vmul.f32 %v273, %v302
    %v330 = vmul.f32 %v274, %v302
    %v331 = vmul.f32 %v275, %v303
    %v332 = vmul.f32 %v276, %v303
    %v333 = vmul.f32 %v277, %v303
    %v334 = vmul.f32 %v278, %v303
    %v335 = vmul.f32 %v279, %v304
    %v336 = vmul.f32 %v280, %v304
    %v337 = vmul.f32 %v281, %v304
    %v338 = vmul.f32 %v282, %v304
    %v339 = vmul.f32 %v283, %v305
    %v340 = vmul.f32 %v284, %v305
    %v341 = vmul.f32 %v285, %v305
    %v342 = vmul.f32 %v286, %v305
    %v343 = vmul.f32 %v287, %v306
    %v344 = vmul.f32 %v288, %v306
    %v345 = vmul.f32 %v289, %v306
    %v346 = vmul.f32 %v290, %v306
    %v347 = vld [vmem:[%s5] sm:$0xff]
    %v348 = vld [vmem:[%s5 + $0x8] sm:$0xff]
    %v349 = vld [vmem:[%s5 + $0x10] sm:$0xff]
    %v350 = vld [vmem:[%s5 + $0x18] sm:$0xff]
    %vm351 = vcmask 261120
    %v353 = vsel %vm351, %v315, 0
    %v356 = vsel %vm351, %v316, 0
    %v359 = vsel %vm351, %v317, 0
    %v362 = vsel %vm351, %v318, 0
    %v365 = vsel %vm351, %v319, 0
    %v368 = vsel %vm351, %v320, 0
    %v371 = vsel %vm351, %v321, 0
    %v374 = vsel %vm351, %v322, 0
    %v377 = vsel %vm351, %v323, 0
    %v380 = vsel %vm351, %v324, 0
    %v383 = vsel %vm351, %v325, 0
    %v386 = vsel %vm351, %v326, 0
    %v389 = vsel %vm351, %v327, 0
    %v392 = vsel %vm351, %v328, 0
    %v395 = vsel %vm351, %v329, 0
    %v398 = vsel %vm351, %v330, 0
    %v401 = vsel %vm351, %v331, 0
    %v404 = vsel %vm351, %v332, 0
    %v407 = vsel %vm351, %v333, 0
    %v410 = vsel %vm351, %v334, 0
    %v413 = vsel %vm351, %v335, 0
    %v416 = vsel %vm351, %v336, 0
    %v419 = vsel %vm351, %v337, 0
    %v422 = vsel %vm351, %v338, 0
    %v425 = vsel %vm351, %v339, 0
    %v428 = vsel %vm351, %v340, 0
    %v431 = vsel %vm351, %v341, 0
    %v434 = vsel %vm351, %v342, 0
    %v437 = vsel %vm351, %v343, 0
    %v440 = vsel %vm351, %v344, 0
    %v443 = vsel %vm351, %v345, 0
    %v446 = vsel %vm351, %v346, 0
    %448 = vmatpush.msra.mxu0 0.0
    %449 = vmatpush.msra.mxu0 0.0
    %450 = vmatpush.msra.mxu0 0.0
    %451 = vmatpush.msra.mxu0 0.0
    %452 = vmatpush.msra.mxu0 0.0
    %453 = vmatpush.msra.mxu0 0.0
    %454 = vmatpush.msra.mxu0 0.0
    %455 = vmatpush.msra.mxu0 0.0
    %456 = vmatpush.msra.mxu0 0.0
    %457 = vmatpush.msra.mxu0 0.0
    %458 = vmatpush.msra.mxu0 0.0
    %459 = vmatpush.msra.mxu0 0.0
    %460 = vmatpush.msra.mxu0 %v350
    %461 = vmatpush.msra.mxu0 %v349
    %462 = vmatpush.msra.mxu0 %v348
    %463 = vmatpush.msra.mxu0 %v347
    %464 = vmatmul.f32.gmra.mxu0 %v353
    %v465 = vpop.f32.mrf.mxu0
    %v466 = vadd.f32 0.0, %v465
    %467 = vmatmul.f32.gmra.mxu0 %v356
    %v468 = vpop.f32.mrf.mxu0
    %v469 = vadd.f32 0.0, %v468
    %470 = vmatmul.f32.gmra.mxu0 %v359
    %v471 = vpop.f32.mrf.mxu0
    %v472 = vadd.f32 0.0, %v471
    %473 = vmatmul.f32.gmra.mxu0 %v362
    %v474 = vpop.f32.mrf.mxu0
    %v475 = vadd.f32 0.0, %v474
    %476 = vmatmul.f32.gmra.mxu0 %v365
    %v477 = vpop.f32.mrf.mxu0
    %v478 = vadd.f32 0.0, %v477
    %479 = vmatmul.f32.gmra.mxu0 %v368
    %v480 = vpop.f32.mrf.mxu0
    %v481 = vadd.f32 0.0, %v480
    %482 = vmatmul.f32.gmra.mxu0 %v371
    %v483 = vpop.f32.mrf.mxu0
    %v484 = vadd.f32 0.0, %v483
    %485 = vmatmul.f32.gmra.mxu0 %v374
    %v486 = vpop.f32.mrf.mxu0
    %v487 = vadd.f32 0.0, %v486
    %488 = vmatmul.f32.gmra.mxu0 %v377
    %v489 = vpop.f32.mrf.mxu0
    %v490 = vadd.f32 0.0, %v489
    %491 = vmatmul.f32.gmra.mxu0 %v380
    %v492 = vpop.f32.mrf.mxu0
    %v493 = vadd.f32 0.0, %v492
    %494 = vmatmul.f32.gmra.mxu0 %v383
    %v495 = vpop.f32.mrf.mxu0
    %v496 = vadd.f32 0.0, %v495
    %497 = vmatmul.f32.gmra.mxu0 %v386
    %v498 = vpop.f32.mrf.mxu0
    %v499 = vadd.f32 0.0, %v498
    %500 = vmatmul.f32.gmra.mxu0 %v389
    %v501 = vpop.f32.mrf.mxu0
    %v502 = vadd.f32 0.0, %v501
    %503 = vmatmul.f32.gmra.mxu0 %v392
    %v504 = vpop.f32.mrf.mxu0
    %v505 = vadd.f32 0.0, %v504
    %506 = vmatmul.f32.gmra.mxu0 %v395
    %v507 = vpop.f32.mrf.mxu0
    %v508 = vadd.f32 0.0, %v507
    %509 = vmatmul.f32.gmra.mxu0 %v398
    %v510 = vpop.f32.mrf.mxu0
    %v511 = vadd.f32 0.0, %v510
    %512 = vmatmul.f32.gmra.mxu0 %v401
    %v513 = vpop.f32.mrf.mxu0
    %v514 = vadd.f32 0.0, %v513
    %515 = vmatmul.f32.gmra.mxu0 %v404
    %v516 = vpop.f32.mrf.mxu0
    %v517 = vadd.f32 0.0, %v516
    %518 = vmatmul.f32.gmra.mxu0 %v407
    %v519 = vpop.f32.mrf.mxu0
    %v520 = vadd.f32 0.0, %v519
    %521 = vmatmul.f32.gmra.mxu0 %v410
    %v522 = vpop.f32.mrf.mxu0
    %v523 = vadd.f32 0.0, %v522
    %524 = vmatmul.f32.gmra.mxu0 %v413
    %v525 = vpop.f32.mrf.mxu0
    %v526 = vadd.f32 0.0, %v525
    %527 = vmatmul.f32.gmra.mxu0 %v416
    %v528 = vpop.f32.mrf.mxu0
    %v529 = vadd.f32 0.0, %v528
    %530 = vmatmul.f32.gmra.mxu0 %v419
    %v531 = vpop.f32.mrf.mxu0
    %v532 = vadd.f32 0.0, %v531
    %533 = vmatmul.f32.gmra.mxu0 %v422
    %v534 = vpop.f32.mrf.mxu0
    %v535 = vadd.f32 0.0, %v534
    %536 = vmatmul.f32.gmra.mxu0 %v425
    %v537 = vpop.f32.mrf.mxu0
    %v538 = vadd.f32 0.0, %v537
    %539 = vmatmul.f32.gmra.mxu0 %v428
    %v540 = vpop.f32.mrf.mxu0
    %v541 = vadd.f32 0.0, %v540
    %542 = vmatmul.f32.gmra.mxu0 %v431
    %v543 = vpop.f32.mrf.mxu0
    %v544 = vadd.f32 0.0, %v543
    %545 = vmatmul.f32.gmra.mxu0 %v434
    %v546 = vpop.f32.mrf.mxu0
    %v547 = vadd.f32 0.0, %v546
    %548 = vmatmul.f32.gmra.mxu0 %v437
    %v549 = vpop.f32.mrf.mxu0
    %v550 = vadd.f32 0.0, %v549
    %551 = vmatmul.f32.gmra.mxu0 %v440
    %v552 = vpop.f32.mrf.mxu0
    %v553 = vadd.f32 0.0, %v552
    %554 = vmatmul.f32.gmra.mxu0 %v443
    %v555 = vpop.f32.mrf.mxu0
    %v556 = vadd.f32 0.0, %v555
    %557 = vmatmul.f32.gmra.mxu0 %v446
    %v558 = vpop.f32.mrf.mxu0
    %v559 = vadd.f32 0.0, %v558
    %560 = vdwg.mxu0
    %v561 = vmul.f32 %v466, %v315
    %v562 = vmul.f32 %v469, %v316
    %v563 = vmul.f32 %v472, %v317
    %v564 = vmul.f32 %v475, %v318
    %v565 = vmul.f32 %v478, %v319
    %v566 = vmul.f32 %v481, %v320
    %v567 = vmul.f32 %v484, %v321
    %v568 = vmul.f32 %v487, %v322
    %v569 = vmul.f32 %v490, %v323
    %v570 = vmul.f32 %v493, %v324
    %v571 = vmul.f32 %v496, %v325
    %v572 = vmul.f32 %v499, %v326
    %v573 = vmul.f32 %v502, %v327
    %v574 = vmul.f32 %v505, %v328
    %v575 = vmul.f32 %v508, %v329
    %v576 = vmul.f32 %v511, %v330
    %v577 = vmul.f32 %v514, %v331
    %v578 = vmul.f32 %v517, %v332
    %v579 = vmul.f32 %v520, %v333
    %v580 = vmul.f32 %v523, %v334
    %v581 = vmul.f32 %v526, %v335
    %v582 = vmul.f32 %v529, %v336
    %v583 = vmul.f32 %v532, %v337
    %v584 = vmul.f32 %v535, %v338
    %v585 = vmul.f32 %v538, %v339
    %v586 = vmul.f32 %v541, %v340
    %v587 = vmul.f32 %v544, %v341
    %v588 = vmul.f32 %v547, %v342
    %v589 = vmul.f32 %v550, %v343
    %v590 = vmul.f32 %v553, %v344
    %v591 = vmul.f32 %v556, %v345
    %v592 = vmul.f32 %v559, %v346
    %v593 = vsel %vm351, %v561, 0.0
    %594 = vadd.xlane.f32.xlu0 %v593
    %v595 = vpop.xlane.xlu0 %594
    %v596 = vsel %vm351, %v562, 0.0
    %597 = vadd.xlane.f32.xlu0 %v596
    %v598 = vpop.xlane.xlu0 %597
    %v599 = vsel %vm351, %v563, 0.0
    %600 = vadd.xlane.f32.xlu0 %v599
    %v601 = vpop.xlane.xlu0 %600
    %v602 = vsel %vm351, %v564, 0.0
    %603 = vadd.xlane.f32.xlu0 %v602
    %v604 = vpop.xlane.xlu0 %603
    %v605 = vsel %vm351, %v565, 0.0
    %606 = vadd.xlane.f32.xlu0 %v605
    %v607 = vpop.xlane.xlu0 %606
    %v608 = vsel %vm351, %v566, 0.0
    %609 = vadd.xlane.f32.xlu0 %v608
    %v610 = vpop.xlane.xlu0 %609
    %v611 = vsel %vm351, %v567, 0.0
    %612 = vadd.xlane.f32.xlu0 %v611
    %v613 = vpop.xlane.xlu0 %612
    %v614 = vsel %vm351, %v568, 0.0
    %615 = vadd.xlane.f32.xlu0 %v614
    %v616 = vpop.xlane.xlu0 %615
    %v617 = vsel %vm351, %v569, 0.0
    %618 = vadd.xlane.f32.xlu0 %v617
    %v619 = vpop.xlane.xlu0 %618
    %v620 = vsel %vm351, %v570, 0.0
    %621 = vadd.xlane.f32.xlu0 %v620
    %v622 = vpop.xlane.xlu0 %621
    %v623 = vsel %vm351, %v571, 0.0
    %624 = vadd.xlane.f32.xlu0 %v623
    %v625 = vpop.xlane.xlu0 %624
    %v626 = vsel %vm351, %v572, 0.0
    %627 = vadd.xlane.f32.xlu0 %v626
    %v628 = vpop.xlane.xlu0 %627
    %v629 = vsel %vm351, %v573, 0.0
    %630 = vadd.xlane.f32.xlu0 %v629
    %v631 = vpop.xlane.xlu0 %630
    %v632 = vsel %vm351, %v574, 0.0
    %633 = vadd.xlane.f32.xlu0 %v632
    %v634 = vpop.xlane.xlu0 %633
    %v635 = vsel %vm351, %v575, 0.0
    %636 = vadd.xlane.f32.xlu0 %v635
    %v637 = vpop.xlane.xlu0 %636
    %v638 = vsel %vm351, %v576, 0.0
    %639 = vadd.xlane.f32.xlu0 %v638
    %v640 = vpop.xlane.xlu0 %639
    %v641 = vsel %vm351, %v577, 0.0
    %642 = vadd.xlane.f32.xlu0 %v641
    %v643 = vpop.xlane.xlu0 %642
    %v644 = vsel %vm351, %v578, 0.0
    %645 = vadd.xlane.f32.xlu0 %v644
    %v646 = vpop.xlane.xlu0 %645
    %v647 = vsel %vm351, %v579, 0.0
    %648 = vadd.xlane.f32.xlu0 %v647
    %v649 = vpop.xlane.xlu0 %648
    %v650 = vsel %vm351, %v580, 0.0
    %651 = vadd.xlane.f32.xlu0 %v650
    %v652 = vpop.xlane.xlu0 %651
    %v653 = vsel %vm351, %v581, 0.0
    %654 = vadd.xlane.f32.xlu0 %v653
    %v655 = vpop.xlane.xlu0 %654
    %v656 = vsel %vm351, %v582, 0.0
    %657 = vadd.xlane.f32.xlu0 %v656
    %v658 = vpop.xlane.xlu0 %657
    %v659 = vsel %vm351, %v583, 0.0
    %660 = vadd.xlane.f32.xlu0 %v659
    %v661 = vpop.xlane.xlu0 %660
    %v662 = vsel %vm351, %v584, 0.0
    %663 = vadd.xlane.f32.xlu0 %v662
    %v664 = vpop.xlane.xlu0 %663
    %v665 = vsel %vm351, %v585, 0.0
    %666 = vadd.xlane.f32.xlu0 %v665
    %v667 = vpop.xlane.xlu0 %666
    %v668 = vsel %vm351, %v586, 0.0
    %669 = vadd.xlane.f32.xlu0 %v668
    %v670 = vpop.xlane.xlu0 %669
    %v671 = vsel %vm351, %v587, 0.0
    %672 = vadd.xlane.f32.xlu0 %v671
    %v673 = vpop.xlane.xlu0 %672
    %v674 = vsel %vm351, %v588, 0.0
    %675 = vadd.xlane.f32.xlu0 %v674
    %v676 = vpop.xlane.xlu0 %675
    %v677 = vsel %vm351, %v589, 0.0
    %678 = vadd.xlane.f32.xlu0 %v677
    %v679 = vpop.xlane.xlu0 %678
    %v680 = vsel %vm351, %v590, 0.0
    %681 = vadd.xlane.f32.xlu0 %v680
    %v682 = vpop.xlane.xlu0 %681
    %v683 = vsel %vm351, %v591, 0.0
    %684 = vadd.xlane.f32.xlu0 %v683
    %v685 = vpop.xlane.xlu0 %684
    %v686 = vsel %vm351, %v592, 0.0
    %687 = vadd.xlane.f32.xlu0 %v686
    %v688 = vpop.xlane.xlu0 %687
    %v690 = vrot.slane %v164, 1
    %v691 = vrot.slane %v164, 2
    %v692 = vrot.slane %v164, 3
    %v693 = vrot.slane %v164, 4
    %v694 = vrot.slane %v164, 5
    %v695 = vrot.slane %v164, 6
    %v696 = vrot.slane %v164, 7
    %v697 = vperm.slane %v164, 0
    %v698 = vperm.slane %v690, 0
    %v699 = vperm.slane %v691, 0
    %v700 = vperm.slane %v692, 0
    %v701 = vperm.slane %v693, 0
    %v702 = vperm.slane %v694, 0
    %v703 = vperm.slane %v695, 0
    %v704 = vperm.slane %v696, 0
    %v713 = vmul.f32 %v315, %v697
    %v714 = vmul.f32 %v316, %v697
    %v715 = vmul.f32 %v317, %v697
    %v716 = vmul.f32 %v318, %v697
    %v717 = vmul.f32 %v319, %v698
    %v718 = vmul.f32 %v320, %v698
    %v719 = vmul.f32 %v321, %v698
    %v720 = vmul.f32 %v322, %v698
    %v721 = vmul.f32 %v323, %v699
    %v722 = vmul.f32 %v324, %v699
    %v723 = vmul.f32 %v325, %v699
    %v724 = vmul.f32 %v326, %v699
    %v725 = vmul.f32 %v327, %v700
    %v726 = vmul.f32 %v328, %v700
    %v727 = vmul.f32 %v329, %v700
    %v728 = vmul.f32 %v330, %v700
    %v729 = vmul.f32 %v331, %v701
    %v730 = vmul.f32 %v332, %v701
    %v731 = vmul.f32 %v333, %v701
    %v732 = vmul.f32 %v334, %v701
    %v733 = vmul.f32 %v335, %v702
    %v734 = vmul.f32 %v336, %v702
    %v735 = vmul.f32 %v337, %v702
    %v736 = vmul.f32 %v338, %v702
    %v737 = vmul.f32 %v339, %v703
    %v738 = vmul.f32 %v340, %v703
    %v739 = vmul.f32 %v341, %v703
    %v740 = vmul.f32 %v342, %v703
    %v741 = vmul.f32 %v343, %v704
    %v742 = vmul.f32 %v344, %v704
    %v743 = vmul.f32 %v345, %v704
    %v744 = vmul.f32 %v346, %v704
    %v745 = vsel %vm351, %v713, 0.0
    %746 = vadd.xlane.f32.xlu0 %v745
    %v747 = vpop.xlane.xlu0 %746
    %v748 = vsel %vm351, %v714, 0.0
    %749 = vadd.xlane.f32.xlu0 %v748
    %v750 = vpop.xlane.xlu0 %749
    %v751 = vsel %vm351, %v715, 0.0
    %752 = vadd.xlane.f32.xlu0 %v751
    %v753 = vpop.xlane.xlu0 %752
    %v754 = vsel %vm351, %v716, 0.0
    %755 = vadd.xlane.f32.xlu0 %v754
    %v756 = vpop.xlane.xlu0 %755
    %v757 = vsel %vm351, %v717, 0.0
    %758 = vadd.xlane.f32.xlu0 %v757
    %v759 = vpop.xlane.xlu0 %758
    %v760 = vsel %vm351, %v718, 0.0
    %761 = vadd.xlane.f32.xlu0 %v760
    %v762 = vpop.xlane.xlu0 %761
    %v763 = vsel %vm351, %v719, 0.0
    %764 = vadd.xlane.f32.xlu0 %v763
    %v765 = vpop.xlane.xlu0 %764
    %v766 = vsel %vm351, %v720, 0.0
    %767 = vadd.xlane.f32.xlu0 %v766
    %v768 = vpop.xlane.xlu0 %767
    %v769 = vsel %vm351, %v721, 0.0
    %770 = vadd.xlane.f32.xlu0 %v769
    %v771 = vpop.xlane.xlu0 %770
    %v772 = vsel %vm351, %v722, 0.0
    %773 = vadd.xlane.f32.xlu0 %v772
    %v774 = vpop.xlane.xlu0 %773
    %v775 = vsel %vm351, %v723, 0.0
    %776 = vadd.xlane.f32.xlu0 %v775
    %v777 = vpop.xlane.xlu0 %776
    %v778 = vsel %vm351, %v724, 0.0
    %779 = vadd.xlane.f32.xlu0 %v778
    %v780 = vpop.xlane.xlu0 %779
    %v781 = vsel %vm351, %v725, 0.0
    %782 = vadd.xlane.f32.xlu0 %v781
    %v783 = vpop.xlane.xlu0 %782
    %v784 = vsel %vm351, %v726, 0.0
    %785 = vadd.xlane.f32.xlu0 %v784
    %v786 = vpop.xlane.xlu0 %785
    %v787 = vsel %vm351, %v727, 0.0
    %788 = vadd.xlane.f32.xlu0 %v787
    %v789 = vpop.xlane.xlu0 %788
    %v790 = vsel %vm351, %v728, 0.0
    %791 = vadd.xlane.f32.xlu0 %v790
    %v792 = vpop.xlane.xlu0 %791
    %v793 = vsel %vm351, %v729, 0.0
    %794 = vadd.xlane.f32.xlu0 %v793
    %v795 = vpop.xlane.xlu0 %794
    %v796 = vsel %vm351, %v730, 0.0
    %797 = vadd.xlane.f32.xlu0 %v796
    %v798 = vpop.xlane.xlu0 %797
    %v799 = vsel %vm351, %v731, 0.0
    %800 = vadd.xlane.f32.xlu0 %v799
    %v801 = vpop.xlane.xlu0 %800
    %v802 = vsel %vm351, %v732, 0.0
    %803 = vadd.xlane.f32.xlu0 %v802
    %v804 = vpop.xlane.xlu0 %803
    %v805 = vsel %vm351, %v733, 0.0
    %806 = vadd.xlane.f32.xlu0 %v805
    %v807 = vpop.xlane.xlu0 %806
    %v808 = vsel %vm351, %v734, 0.0
    %809 = vadd.xlane.f32.xlu0 %v808
    %v810 = vpop.xlane.xlu0 %809
    %v811 = vsel %vm351, %v735, 0.0
    %812 = vadd.xlane.f32.xlu0 %v811
    %v813 = vpop.xlane.xlu0 %812
    %v814 = vsel %vm351, %v736, 0.0
    %815 = vadd.xlane.f32.xlu0 %v814
    %v816 = vpop.xlane.xlu0 %815
    %v817 = vsel %vm351, %v737, 0.0
    %818 = vadd.xlane.f32.xlu0 %v817
    %v819 = vpop.xlane.xlu0 %818
    %v820 = vsel %vm351, %v738, 0.0
    %821 = vadd.xlane.f32.xlu0 %v820
    %v822 = vpop.xlane.xlu0 %821
    %v823 = vsel %vm351, %v739, 0.0
    %824 = vadd.xlane.f32.xlu0 %v823
    %v825 = vpop.xlane.xlu0 %824
    %v826 = vsel %vm351, %v740, 0.0
    %827 = vadd.xlane.f32.xlu0 %v826
    %v828 = vpop.xlane.xlu0 %827
    %v829 = vsel %vm351, %v741, 0.0
    %830 = vadd.xlane.f32.xlu0 %v829
    %v831 = vpop.xlane.xlu0 %830
    %v832 = vsel %vm351, %v742, 0.0
    %833 = vadd.xlane.f32.xlu0 %v832
    %v834 = vpop.xlane.xlu0 %833
    %v835 = vsel %vm351, %v743, 0.0
    %836 = vadd.xlane.f32.xlu0 %v835
    %v837 = vpop.xlane.xlu0 %836
    %v838 = vsel %vm351, %v744, 0.0
    %839 = vadd.xlane.f32.xlu0 %v838
    %v840 = vpop.xlane.xlu0 %839
    %v841 = vmul.f32 %v747, 2.0
    %v842 = vmul.f32 %v750, 2.0
    %v843 = vmul.f32 %v753, 2.0
    %v844 = vmul.f32 %v756, 2.0
    %v845 = vmul.f32 %v759, 2.0
    %v846 = vmul.f32 %v762, 2.0
    %v847 = vmul.f32 %v765, 2.0
    %v848 = vmul.f32 %v768, 2.0
    %v849 = vmul.f32 %v771, 2.0
    %v850 = vmul.f32 %v774, 2.0
    %v851 = vmul.f32 %v777, 2.0
    %v852 = vmul.f32 %v780, 2.0
    %v853 = vmul.f32 %v783, 2.0
    %v854 = vmul.f32 %v786, 2.0
    %v855 = vmul.f32 %v789, 2.0
    %v856 = vmul.f32 %v792, 2.0
    %v857 = vmul.f32 %v795, 2.0
    %v858 = vmul.f32 %v798, 2.0
    %v859 = vmul.f32 %v801, 2.0
    %v860 = vmul.f32 %v804, 2.0
    %v861 = vmul.f32 %v807, 2.0
    %v862 = vmul.f32 %v810, 2.0
    %v863 = vmul.f32 %v813, 2.0
    %v864 = vmul.f32 %v816, 2.0
    %v865 = vmul.f32 %v819, 2.0
    %v866 = vmul.f32 %v822, 2.0
    %v867 = vmul.f32 %v825, 2.0
    %v868 = vmul.f32 %v828, 2.0
    %v869 = vmul.f32 %v831, 2.0
    %v870 = vmul.f32 %v834, 2.0
    %v871 = vmul.f32 %v837, 2.0
    %v872 = vmul.f32 %v840, 2.0
    %v873 = vsub.f32 %v595, %v841
    %v874 = vsub.f32 %v598, %v842
    %v875 = vsub.f32 %v601, %v843
    %v876 = vsub.f32 %v604, %v844
    %v877 = vsub.f32 %v607, %v845
    %v878 = vsub.f32 %v610, %v846
    %v879 = vsub.f32 %v613, %v847
    %v880 = vsub.f32 %v616, %v848
    %v881 = vsub.f32 %v619, %v849
    %v882 = vsub.f32 %v622, %v850
    %v883 = vsub.f32 %v625, %v851
    %v884 = vsub.f32 %v628, %v852
    %v885 = vsub.f32 %v631, %v853
    %v886 = vsub.f32 %v634, %v854
    %v887 = vsub.f32 %v637, %v855
    %v888 = vsub.f32 %v640, %v856
    %v889 = vsub.f32 %v643, %v857
    %v890 = vsub.f32 %v646, %v858
    %v891 = vsub.f32 %v649, %v859
    %v892 = vsub.f32 %v652, %v860
    %v893 = vsub.f32 %v655, %v861
    %v894 = vsub.f32 %v658, %v862
    %v895 = vsub.f32 %v661, %v863
    %v896 = vsub.f32 %v664, %v864
    %v897 = vsub.f32 %v667, %v865
    %v898 = vsub.f32 %v670, %v866
    %v899 = vsub.f32 %v673, %v867
    %v900 = vsub.f32 %v676, %v868
    %v901 = vsub.f32 %v679, %v869
    %v902 = vsub.f32 %v682, %v870
    %v903 = vsub.f32 %v685, %v871
    %v904 = vsub.f32 %v688, %v872
    %v906 = vperm.slane %v170, 0
    %v907 = vperm.slane %v170, 1
    %v908 = vperm.slane %v170, 2
    %v909 = vperm.slane %v170, 3
    %v910 = vperm.slane %v170, 4
    %v911 = vperm.slane %v170, 5
    %v912 = vperm.slane %v170, 6
    %v913 = vperm.slane %v170, 7
    %v922 = vadd.f32 %v873, %v906
    %v923 = vadd.f32 %v874, %v906
    %v924 = vadd.f32 %v875, %v906
    %v925 = vadd.f32 %v876, %v906
    %v926 = vadd.f32 %v877, %v907
    %v927 = vadd.f32 %v878, %v907
    %v928 = vadd.f32 %v879, %v907
    %v929 = vadd.f32 %v880, %v907
    %v930 = vadd.f32 %v881, %v908
    %v931 = vadd.f32 %v882, %v908
    %v932 = vadd.f32 %v883, %v908
    %v933 = vadd.f32 %v884, %v908
    %v934 = vadd.f32 %v885, %v909
    %v935 = vadd.f32 %v886, %v909
    %v936 = vadd.f32 %v887, %v909
    %v937 = vadd.f32 %v888, %v909
    %v938 = vadd.f32 %v889, %v910
    %v939 = vadd.f32 %v890, %v910
    %v940 = vadd.f32 %v891, %v910
    %v941 = vadd.f32 %v892, %v910
    %v942 = vadd.f32 %v893, %v911
    %v943 = vadd.f32 %v894, %v911
    %v944 = vadd.f32 %v895, %v911
    %v945 = vadd.f32 %v896, %v911
    %v946 = vadd.f32 %v897, %v912
    %v947 = vadd.f32 %v898, %v912
    %v948 = vadd.f32 %v899, %v912
    %v949 = vadd.f32 %v900, %v912
    %v950 = vadd.f32 %v901, %v913
    %v951 = vadd.f32 %v902, %v913
    %v952 = vadd.f32 %v903, %v913
    %v953 = vadd.f32 %v904, %v913
    %v954 = vmul.f32 %v922, 0.00390625
    %v955 = vmul.f32 %v923, 0.00390625
    %v956 = vmul.f32 %v924, 0.00390625
    %v957 = vmul.f32 %v925, 0.00390625
    %v958 = vmul.f32 %v926, 0.00390625
    %v959 = vmul.f32 %v927, 0.00390625
    %v960 = vmul.f32 %v928, 0.00390625
    %v961 = vmul.f32 %v929, 0.00390625
    %v962 = vmul.f32 %v930, 0.00390625
    %v963 = vmul.f32 %v931, 0.00390625
    %v964 = vmul.f32 %v932, 0.00390625
    %v965 = vmul.f32 %v933, 0.00390625
    %v966 = vmul.f32 %v934, 0.00390625
    %v967 = vmul.f32 %v935, 0.00390625
    %v968 = vmul.f32 %v936, 0.00390625
    %v969 = vmul.f32 %v937, 0.00390625
    %v970 = vmul.f32 %v938, 0.00390625
    %v971 = vmul.f32 %v939, 0.00390625
    %v972 = vmul.f32 %v940, 0.00390625
    %v973 = vmul.f32 %v941, 0.00390625
    %v974 = vmul.f32 %v942, 0.00390625
    %v975 = vmul.f32 %v943, 0.00390625
    %v976 = vmul.f32 %v944, 0.00390625
    %v977 = vmul.f32 %v945, 0.00390625
    %v978 = vmul.f32 %v946, 0.00390625
    %v979 = vmul.f32 %v947, 0.00390625
    %v980 = vmul.f32 %v948, 0.00390625
    %v981 = vmul.f32 %v949, 0.00390625
    %v982 = vmul.f32 %v950, 0.00390625
    %v983 = vmul.f32 %v951, 0.00390625
    %v984 = vmul.f32 %v952, 0.00390625
    %v985 = vmul.f32 %v953, 0.00390625
    %v986 = vsel %vm351, %v259, 0.0
    %987 = vadd.xlane.f32.xlu0 %v986
    %v988 = vpop.xlane.xlu0 %987
    %v989 = vsel %vm351, %v260, 0.0
    %990 = vadd.xlane.f32.xlu0 %v989
    %v991 = vpop.xlane.xlu0 %990
    %v992 = vsel %vm351, %v261, 0.0
    %993 = vadd.xlane.f32.xlu0 %v992
    %v994 = vpop.xlane.xlu0 %993
    %v995 = vsel %vm351, %v262, 0.0
    %996 = vadd.xlane.f32.xlu0 %v995
    %v997 = vpop.xlane.xlu0 %996
    %v998 = vsel %vm351, %v263, 0.0
    %999 = vadd.xlane.f32.xlu0 %v998
    %v1000 = vpop.xlane.xlu0 %999
    %v1001 = vsel %vm351, %v264, 0.0
    %1002 = vadd.xlane.f32.xlu0 %v1001
    %v1003 = vpop.xlane.xlu0 %1002
    %v1004 = vsel %vm351, %v265, 0.0
    %1005 = vadd.xlane.f32.xlu0 %v1004
    %v1006 = vpop.xlane.xlu0 %1005
    %v1007 = vsel %vm351, %v266, 0.0
    %1008 = vadd.xlane.f32.xlu0 %v1007
    %v1009 = vpop.xlane.xlu0 %1008
    %v1010 = vsel %vm351, %v267, 0.0
    %1011 = vadd.xlane.f32.xlu0 %v1010
    %v1012 = vpop.xlane.xlu0 %1011
    %v1013 = vsel %vm351, %v268, 0.0
    %1014 = vadd.xlane.f32.xlu0 %v1013
    %v1015 = vpop.xlane.xlu0 %1014
    %v1016 = vsel %vm351, %v269, 0.0
    %1017 = vadd.xlane.f32.xlu0 %v1016
    %v1018 = vpop.xlane.xlu0 %1017
    %v1019 = vsel %vm351, %v270, 0.0
    %1020 = vadd.xlane.f32.xlu0 %v1019
    %v1021 = vpop.xlane.xlu0 %1020
    %v1022 = vsel %vm351, %v271, 0.0
    %1023 = vadd.xlane.f32.xlu0 %v1022
    %v1024 = vpop.xlane.xlu0 %1023
    %v1025 = vsel %vm351, %v272, 0.0
    %1026 = vadd.xlane.f32.xlu0 %v1025
    %v1027 = vpop.xlane.xlu0 %1026
    %v1028 = vsel %vm351, %v273, 0.0
    %1029 = vadd.xlane.f32.xlu0 %v1028
    %v1030 = vpop.xlane.xlu0 %1029
    %v1031 = vsel %vm351, %v274, 0.0
    %1032 = vadd.xlane.f32.xlu0 %v1031
    %v1033 = vpop.xlane.xlu0 %1032
    %v1034 = vsel %vm351, %v275, 0.0
    %1035 = vadd.xlane.f32.xlu0 %v1034
    %v1036 = vpop.xlane.xlu0 %1035
    %v1037 = vsel %vm351, %v276, 0.0
    %1038 = vadd.xlane.f32.xlu0 %v1037
    %v1039 = vpop.xlane.xlu0 %1038
    %v1040 = vsel %vm351, %v277, 0.0
    %1041 = vadd.xlane.f32.xlu0 %v1040
    %v1042 = vpop.xlane.xlu0 %1041
    %v1043 = vsel %vm351, %v278, 0.0
    %1044 = vadd.xlane.f32.xlu0 %v1043
    %v1045 = vpop.xlane.xlu0 %1044
    %v1046 = vsel %vm351, %v279, 0.0
    %1047 = vadd.xlane.f32.xlu0 %v1046
    %v1048 = vpop.xlane.xlu0 %1047
    %v1049 = vsel %vm351, %v280, 0.0
    %1050 = vadd.xlane.f32.xlu0 %v1049
    %v1051 = vpop.xlane.xlu0 %1050
    %v1052 = vsel %vm351, %v281, 0.0
    %1053 = vadd.xlane.f32.xlu0 %v1052
    %v1054 = vpop.xlane.xlu0 %1053
    %v1055 = vsel %vm351, %v282, 0.0
    %1056 = vadd.xlane.f32.xlu0 %v1055
    %v1057 = vpop.xlane.xlu0 %1056
    %v1058 = vsel %vm351, %v283, 0.0
    %1059 = vadd.xlane.f32.xlu0 %v1058
    %v1060 = vpop.xlane.xlu0 %1059
    %v1061 = vsel %vm351, %v284, 0.0
    %1062 = vadd.xlane.f32.xlu0 %v1061
    %v1063 = vpop.xlane.xlu0 %1062
    %v1064 = vsel %vm351, %v285, 0.0
    %1065 = vadd.xlane.f32.xlu0 %v1064
    %v1066 = vpop.xlane.xlu0 %1065
    %v1067 = vsel %vm351, %v286, 0.0
    %1068 = vadd.xlane.f32.xlu0 %v1067
    %v1069 = vpop.xlane.xlu0 %1068
    %v1070 = vsel %vm351, %v287, 0.0
    %1071 = vadd.xlane.f32.xlu0 %v1070
    %v1072 = vpop.xlane.xlu0 %1071
    %v1073 = vsel %vm351, %v288, 0.0
    %1074 = vadd.xlane.f32.xlu0 %v1073
    %v1075 = vpop.xlane.xlu0 %1074
    %v1076 = vsel %vm351, %v289, 0.0
    %1077 = vadd.xlane.f32.xlu0 %v1076
    %v1078 = vpop.xlane.xlu0 %1077
    %v1079 = vsel %vm351, %v290, 0.0
    %1080 = vadd.xlane.f32.xlu0 %v1079
    %v1081 = vpop.xlane.xlu0 %1080
    %v1082 = vmul.f32 %v988, 0.01
    %v1083 = vmul.f32 %v991, 0.01
    %v1084 = vmul.f32 %v994, 0.01
    %v1085 = vmul.f32 %v997, 0.01
    %v1086 = vmul.f32 %v1000, 0.01
    %v1087 = vmul.f32 %v1003, 0.01
    %v1088 = vmul.f32 %v1006, 0.01
    %v1089 = vmul.f32 %v1009, 0.01
    %v1090 = vmul.f32 %v1012, 0.01
    %v1091 = vmul.f32 %v1015, 0.01
    %v1092 = vmul.f32 %v1018, 0.01
    %v1093 = vmul.f32 %v1021, 0.01
    %v1094 = vmul.f32 %v1024, 0.01
    %v1095 = vmul.f32 %v1027, 0.01
    %v1096 = vmul.f32 %v1030, 0.01
    %v1097 = vmul.f32 %v1033, 0.01
    %v1098 = vmul.f32 %v1036, 0.01
    %v1099 = vmul.f32 %v1039, 0.01
    %v1100 = vmul.f32 %v1042, 0.01
    %v1101 = vmul.f32 %v1045, 0.01
    %v1102 = vmul.f32 %v1048, 0.01
    %v1103 = vmul.f32 %v1051, 0.01
    %v1104 = vmul.f32 %v1054, 0.01
    %v1105 = vmul.f32 %v1057, 0.01
    %v1106 = vmul.f32 %v1060, 0.01
    %v1107 = vmul.f32 %v1063, 0.01
    %v1108 = vmul.f32 %v1066, 0.01
    %v1109 = vmul.f32 %v1069, 0.01
    %v1110 = vmul.f32 %v1072, 0.01
    %v1111 = vmul.f32 %v1075, 0.01
    %v1112 = vmul.f32 %v1078, 0.01
    %v1113 = vmul.f32 %v1081, 0.01
    %v1114 = vadd.f32 %v954, %v1082
    %v1115 = vadd.f32 %v955, %v1083
    %v1116 = vadd.f32 %v956, %v1084
    %v1117 = vadd.f32 %v957, %v1085
    %v1118 = vadd.f32 %v958, %v1086
    %v1119 = vadd.f32 %v959, %v1087
    %v1120 = vadd.f32 %v960, %v1088
    %v1121 = vadd.f32 %v961, %v1089
    %v1122 = vadd.f32 %v962, %v1090
    %v1123 = vadd.f32 %v963, %v1091
    %v1124 = vadd.f32 %v964, %v1092
    %v1125 = vadd.f32 %v965, %v1093
    %v1126 = vadd.f32 %v966, %v1094
    %v1127 = vadd.f32 %v967, %v1095
    %v1128 = vadd.f32 %v968, %v1096
    %v1129 = vadd.f32 %v969, %v1097
    %v1130 = vadd.f32 %v970, %v1098
    %v1131 = vadd.f32 %v971, %v1099
    %v1132 = vadd.f32 %v972, %v1100
    %v1133 = vadd.f32 %v973, %v1101
    %v1134 = vadd.f32 %v974, %v1102
    %v1135 = vadd.f32 %v975, %v1103
    %v1136 = vadd.f32 %v976, %v1104
    %v1137 = vadd.f32 %v977, %v1105
    %v1138 = vadd.f32 %v978, %v1106
    %v1139 = vadd.f32 %v979, %v1107
    %v1140 = vadd.f32 %v980, %v1108
    %v1141 = vadd.f32 %v981, %v1109
    %v1142 = vadd.f32 %v982, %v1110
    %v1143 = vadd.f32 %v983, %v1111
    %v1144 = vadd.f32 %v984, %v1112
    %v1145 = vadd.f32 %v985, %v1113
    %v1178 = vlaneseq
    %v1179 = vand.u32 %v1178, 127
    %v1180 = vperm.slane %v988, %v1179
    %v1181 = vadd.s32 %v1179, 4294967288
    %v1182 = vperm.slane %v991, %v1181
    %vm1183 = vcmask 130112
    %v1184 = vsel %vm1183, %v1182, %v1180
    %v1185 = vadd.s32 %v1179, 4294967280
    %v1186 = vperm.slane %v994, %v1185
    %vm1187 = vcmask 195712
    %v1188 = vsel %vm1187, %v1186, %v1184
    %v1189 = vadd.s32 %v1179, 4294967272
    %v1190 = vperm.slane %v997, %v1189
    %vm1191 = vcmask 261312
    %v1192 = vsel %vm1191, %v1190, %v1188
    %v1193 = vperm.slane %v1000, %v1179
    %v1194 = vperm.slane %v1003, %v1181
    %v1195 = vsel %vm1183, %v1194, %v1193
    %v1196 = vperm.slane %v1006, %v1185
    %v1197 = vsel %vm1187, %v1196, %v1195
    %v1198 = vperm.slane %v1009, %v1189
    %v1199 = vsel %vm1191, %v1198, %v1197
    %v1200 = vperm.slane %v1012, %v1179
    %v1201 = vperm.slane %v1015, %v1181
    %v1202 = vsel %vm1183, %v1201, %v1200
    %v1203 = vperm.slane %v1018, %v1185
    %v1204 = vsel %vm1187, %v1203, %v1202
    %v1205 = vperm.slane %v1021, %v1189
    %v1206 = vsel %vm1191, %v1205, %v1204
    %v1207 = vperm.slane %v1024, %v1179
    %v1208 = vperm.slane %v1027, %v1181
    %v1209 = vsel %vm1183, %v1208, %v1207
    %v1210 = vperm.slane %v1030, %v1185
    %v1211 = vsel %vm1187, %v1210, %v1209
    %v1212 = vperm.slane %v1033, %v1189
    %v1213 = vsel %vm1191, %v1212, %v1211
    %v1214 = vperm.slane %v1036, %v1179
    %v1215 = vperm.slane %v1039, %v1181
    %v1216 = vsel %vm1183, %v1215, %v1214
    %v1217 = vperm.slane %v1042, %v1185
    %v1218 = vsel %vm1187, %v1217, %v1216
    %v1219 = vperm.slane %v1045, %v1189
    %v1220 = vsel %vm1191, %v1219, %v1218
    %v1221 = vperm.slane %v1048, %v1179
    %v1222 = vperm.slane %v1051, %v1181
    %v1223 = vsel %vm1183, %v1222, %v1221
    %v1224 = vperm.slane %v1054, %v1185
    %v1225 = vsel %vm1187, %v1224, %v1223
    %v1226 = vperm.slane %v1057, %v1189
    %v1227 = vsel %vm1191, %v1226, %v1225
    %v1228 = vperm.slane %v1060, %v1179
    %v1229 = vperm.slane %v1063, %v1181
    %v1230 = vsel %vm1183, %v1229, %v1228
    %v1231 = vperm.slane %v1066, %v1185
    %v1232 = vsel %vm1187, %v1231, %v1230
    %v1233 = vperm.slane %v1069, %v1189
    %v1234 = vsel %vm1191, %v1233, %v1232
    %v1235 = vperm.slane %v1072, %v1179
    %v1236 = vperm.slane %v1075, %v1181
    %v1237 = vsel %vm1183, %v1236, %v1235
    %v1238 = vperm.slane %v1078, %v1185
    %v1239 = vsel %vm1187, %v1238, %v1237
    %v1240 = vperm.slane %v1081, %v1189
    %v1241 = vsel %vm1191, %v1240, %v1239
    %vm1242 = vcmask 1041409
    %v1243 = vsel %vm1242, %v1199, %v1192
    %vm1244 = vcmask 1042434
    %v1245 = vsel %vm1244, %v1206, %v1243
    %vm1246 = vcmask 1043459
    %v1247 = vsel %vm1246, %v1213, %v1245
    %vm1248 = vcmask 1044484
    %v1249 = vsel %vm1248, %v1220, %v1247
    %vm1250 = vcmask 1045509
    %v1251 = vsel %vm1250, %v1227, %v1249
    %vm1252 = vcmask 1046534
    %v1253 = vsel %vm1252, %v1234, %v1251
    %vm1254 = vcmask 1047559
    %v1255 = vsel %vm1254, %v1241, %v1253
    %v1257 = vsel %vm351, %v1255, 0.0
    %1258 = vadd.xlane.f32.xlu0 %v1257
    %v1259 = vpop.xlane.xlu0 %1258
    %vm1260 = vcmp.gt.f32.partialorder %v1259, 0.0
    %v1261 = vsel %vm1260, 1, 0
    %vm1262 = vcmp.eq.s32.totalorder %v1261, 1
    %1295 = vset.pattern.permute.xlu0 0
    %1296 = vperm.xlu0 %1295, %v1114
    %v1297 = vpop.permute.xlu0 %1296
    %1298 = vset.pattern.permute.xlu0 0
    %1299 = vperm.xlu0 %1298, %v1115
    %v1300 = vpop.permute.xlu0 %1299
    %1301 = vset.pattern.permute.xlu0 0
    %1302 = vperm.xlu0 %1301, %v1116
    %v1303 = vpop.permute.xlu0 %1302
    %1304 = vset.pattern.permute.xlu0 0
    %1305 = vperm.xlu0 %1304, %v1117
    %v1306 = vpop.permute.xlu0 %1305
    %1307 = vset.pattern.permute.xlu0 0
    %1308 = vperm.xlu0 %1307, %v1118
    %v1309 = vpop.permute.xlu0 %1308
    %1310 = vset.pattern.permute.xlu0 0
    %1311 = vperm.xlu0 %1310, %v1119
    %v1312 = vpop.permute.xlu0 %1311
    %1313 = vset.pattern.permute.xlu0 0
    %1314 = vperm.xlu0 %1313, %v1120
    %v1315 = vpop.permute.xlu0 %1314
    %1316 = vset.pattern.permute.xlu0 0
    %1317 = vperm.xlu0 %1316, %v1121
    %v1318 = vpop.permute.xlu0 %1317
    %1319 = vset.pattern.permute.xlu0 0
    %1320 = vperm.xlu0 %1319, %v1122
    %v1321 = vpop.permute.xlu0 %1320
    %1322 = vset.pattern.permute.xlu0 0
    %1323 = vperm.xlu0 %1322, %v1123
    %v1324 = vpop.permute.xlu0 %1323
    %1325 = vset.pattern.permute.xlu0 0
    %1326 = vperm.xlu0 %1325, %v1124
    %v1327 = vpop.permute.xlu0 %1326
    %1328 = vset.pattern.permute.xlu0 0
    %1329 = vperm.xlu0 %1328, %v1125
    %v1330 = vpop.permute.xlu0 %1329
    %1331 = vset.pattern.permute.xlu0 0
    %1332 = vperm.xlu0 %1331, %v1126
    %v1333 = vpop.permute.xlu0 %1332
    %1334 = vset.pattern.permute.xlu0 0
    %1335 = vperm.xlu0 %1334, %v1127
    %v1336 = vpop.permute.xlu0 %1335
    %1337 = vset.pattern.permute.xlu0 0
    %1338 = vperm.xlu0 %1337, %v1128
    %v1339 = vpop.permute.xlu0 %1338
    %1340 = vset.pattern.permute.xlu0 0
    %1341 = vperm.xlu0 %1340, %v1129
    %v1342 = vpop.permute.xlu0 %1341
    %1343 = vset.pattern.permute.xlu0 0
    %1344 = vperm.xlu0 %1343, %v1130
    %v1345 = vpop.permute.xlu0 %1344
    %1346 = vset.pattern.permute.xlu0 0
    %1347 = vperm.xlu0 %1346, %v1131
    %v1348 = vpop.permute.xlu0 %1347
    %1349 = vset.pattern.permute.xlu0 0
    %1350 = vperm.xlu0 %1349, %v1132
    %v1351 = vpop.permute.xlu0 %1350
    %1352 = vset.pattern.permute.xlu0 0
    %1353 = vperm.xlu0 %1352, %v1133
    %v1354 = vpop.permute.xlu0 %1353
    %1355 = vset.pattern.permute.xlu0 0
    %1356 = vperm.xlu0 %1355, %v1134
    %v1357 = vpop.permute.xlu0 %1356
    %1358 = vset.pattern.permute.xlu0 0
    %1359 = vperm.xlu0 %1358, %v1135
    %v1360 = vpop.permute.xlu0 %1359
    %1361 = vset.pattern.permute.xlu0 0
    %1362 = vperm.xlu0 %1361, %v1136
    %v1363 = vpop.permute.xlu0 %1362
    %1364 = vset.pattern.permute.xlu0 0
    %1365 = vperm.xlu0 %1364, %v1137
    %v1366 = vpop.permute.xlu0 %1365
    %1367 = vset.pattern.permute.xlu0 0
    %1368 = vperm.xlu0 %1367, %v1138
    %v1369 = vpop.permute.xlu0 %1368
    %1370 = vset.pattern.permute.xlu0 0
    %1371 = vperm.xlu0 %1370, %v1139
    %v1372 = vpop.permute.xlu0 %1371
    %1373 = vset.pattern.permute.xlu0 0
    %1374 = vperm.xlu0 %1373, %v1140
    %v1375 = vpop.permute.xlu0 %1374
    %1376 = vset.pattern.permute.xlu0 0
    %1377 = vperm.xlu0 %1376, %v1141
    %v1378 = vpop.permute.xlu0 %1377
    %1379 = vset.pattern.permute.xlu0 0
    %1380 = vperm.xlu0 %1379, %v1142
    %v1381 = vpop.permute.xlu0 %1380
    %1382 = vset.pattern.permute.xlu0 0
    %1383 = vperm.xlu0 %1382, %v1143
    %v1384 = vpop.permute.xlu0 %1383
    %1385 = vset.pattern.permute.xlu0 0
    %1386 = vperm.xlu0 %1385, %v1144
    %v1387 = vpop.permute.xlu0 %1386
    %1388 = vset.pattern.permute.xlu0 0
    %1389 = vperm.xlu0 %1388, %v1145
    %v1390 = vpop.permute.xlu0 %1389
    %v1391 = vperm.slane %v1297, %v1179
    %v1392 = vperm.slane %v1300, %v1181
    %v1393 = vsel %vm1183, %v1392, %v1391
    %v1394 = vperm.slane %v1303, %v1185
    %v1395 = vsel %vm1187, %v1394, %v1393
    %v1396 = vperm.slane %v1306, %v1189
    %v1397 = vsel %vm1191, %v1396, %v1395
    %v1398 = vperm.slane %v1309, %v1179
    %v1399 = vperm.slane %v1312, %v1181
    %v1400 = vsel %vm1183, %v1399, %v1398
    %v1401 = vperm.slane %v1315, %v1185
    %v1402 = vsel %vm1187, %v1401, %v1400
    %v1403 = vperm.slane %v1318, %v1189
    %v1404 = vsel %vm1191, %v1403, %v1402
    %v1405 = vperm.slane %v1321, %v1179
    %v1406 = vperm.slane %v1324, %v1181
    %v1407 = vsel %vm1183, %v1406, %v1405
    %v1408 = vperm.slane %v1327, %v1185
    %v1409 = vsel %vm1187, %v1408, %v1407
    %v1410 = vperm.slane %v1330, %v1189
    %v1411 = vsel %vm1191, %v1410, %v1409
    %v1412 = vperm.slane %v1333, %v1179
    %v1413 = vperm.slane %v1336, %v1181
    %v1414 = vsel %vm1183, %v1413, %v1412
    %v1415 = vperm.slane %v1339, %v1185
    %v1416 = vsel %vm1187, %v1415, %v1414
    %v1417 = vperm.slane %v1342, %v1189
    %v1418 = vsel %vm1191, %v1417, %v1416
    %v1419 = vperm.slane %v1345, %v1179
    %v1420 = vperm.slane %v1348, %v1181
    %v1421 = vsel %vm1183, %v1420, %v1419
    %v1422 = vperm.slane %v1351, %v1185
    %v1423 = vsel %vm1187, %v1422, %v1421
    %v1424 = vperm.slane %v1354, %v1189
    %v1425 = vsel %vm1191, %v1424, %v1423
    %v1426 = vperm.slane %v1357, %v1179
    %v1427 = vperm.slane %v1360, %v1181
    %v1428 = vsel %vm1183, %v1427, %v1426
    %v1429 = vperm.slane %v1363, %v1185
    %v1430 = vsel %vm1187, %v1429, %v1428
    %v1431 = vperm.slane %v1366, %v1189
    %v1432 = vsel %vm1191, %v1431, %v1430
    %v1433 = vperm.slane %v1369, %v1179
    %v1434 = vperm.slane %v1372, %v1181
    %v1435 = vsel %vm1183, %v1434, %v1433
    %v1436 = vperm.slane %v1375, %v1185
    %v1437 = vsel %vm1187, %v1436, %v1435
    %v1438 = vperm.slane %v1378, %v1189
    %v1439 = vsel %vm1191, %v1438, %v1437
    %v1440 = vperm.slane %v1381, %v1179
    %v1441 = vperm.slane %v1384, %v1181
    %v1442 = vsel %vm1183, %v1441, %v1440
    %v1443 = vperm.slane %v1387, %v1185
    %v1444 = vsel %vm1187, %v1443, %v1442
    %v1445 = vperm.slane %v1390, %v1189
    %v1446 = vsel %vm1191, %v1445, %v1444
    %v1447 = vsel %vm1242, %v1404, %v1397
    %v1448 = vsel %vm1244, %v1411, %v1447
    %v1449 = vsel %vm1246, %v1418, %v1448
    %v1450 = vsel %vm1248, %v1425, %v1449
    %v1451 = vsel %vm1250, %v1432, %v1450
    %v1452 = vsel %vm1252, %v1439, %v1451
    %v1453 = vsel %vm1254, %v1446, %v1452
    %v1455 = vsel %vm1262, %v1453, 0.0
    %v1456 = vsub.f32 1.0, %v259
    %v1457 = vsub.f32 1.0, %v260
    %v1458 = vsub.f32 1.0, %v261
    %v1459 = vsub.f32 1.0, %v262
    %v1460 = vsub.f32 1.0, %v263
    %v1461 = vsub.f32 1.0, %v264
    %v1462 = vsub.f32 1.0, %v265
    %v1463 = vsub.f32 1.0, %v266
    %v1464 = vsub.f32 1.0, %v267
    %v1465 = vsub.f32 1.0, %v268
    %v1466 = vsub.f32 1.0, %v269
    %v1467 = vsub.f32 1.0, %v270
    %v1468 = vsub.f32 1.0, %v271
    %v1469 = vsub.f32 1.0, %v272
    %v1470 = vsub.f32 1.0, %v273
    %v1471 = vsub.f32 1.0, %v274
    %v1472 = vsub.f32 1.0, %v275
    %v1473 = vsub.f32 1.0, %v276
    %v1474 = vsub.f32 1.0, %v277
    %v1475 = vsub.f32 1.0, %v278
    %v1476 = vsub.f32 1.0, %v279
    %v1477 = vsub.f32 1.0, %v280
    %v1478 = vsub.f32 1.0, %v281
    %v1479 = vsub.f32 1.0, %v282
    %v1480 = vsub.f32 1.0, %v283
    %v1481 = vsub.f32 1.0, %v284
    %v1482 = vsub.f32 1.0, %v285
    %v1483 = vsub.f32 1.0, %v286
    %v1484 = vsub.f32 1.0, %v287
    %v1485 = vsub.f32 1.0, %v288
    %v1486 = vsub.f32 1.0, %v289
    %v1487 = vsub.f32 1.0, %v290
    %v1488 = vsub.f32 %v1456, %v179
    %v1489 = vsub.f32 %v1457, %v179
    %v1490 = vsub.f32 %v1458, %v179
    %v1491 = vsub.f32 %v1459, %v179
    %v1492 = vsub.f32 %v1460, %v180
    %v1493 = vsub.f32 %v1461, %v180
    %v1494 = vsub.f32 %v1462, %v180
    %v1495 = vsub.f32 %v1463, %v180
    %v1496 = vsub.f32 %v1464, %v181
    %v1497 = vsub.f32 %v1465, %v181
    %v1498 = vsub.f32 %v1466, %v181
    %v1499 = vsub.f32 %v1467, %v181
    %v1500 = vsub.f32 %v1468, %v182
    %v1501 = vsub.f32 %v1469, %v182
    %v1502 = vsub.f32 %v1470, %v182
    %v1503 = vsub.f32 %v1471, %v182
    %v1504 = vsub.f32 %v1472, %v183
    %v1505 = vsub.f32 %v1473, %v183
    %v1506 = vsub.f32 %v1474, %v183
    %v1507 = vsub.f32 %v1475, %v183
    %v1508 = vsub.f32 %v1476, %v184
    %v1509 = vsub.f32 %v1477, %v184
    %v1510 = vsub.f32 %v1478, %v184
    %v1511 = vsub.f32 %v1479, %v184
    %v1512 = vsub.f32 %v1480, %v185
    %v1513 = vsub.f32 %v1481, %v185
    %v1514 = vsub.f32 %v1482, %v185
    %v1515 = vsub.f32 %v1483, %v185
    %v1516 = vsub.f32 %v1484, %v186
    %v1517 = vsub.f32 %v1485, %v186
    %v1518 = vsub.f32 %v1486, %v186
    %v1519 = vsub.f32 %v1487, %v186
    %v1520 = vand.u32 2147483647, %v1488
    %v1521 = vand.u32 2147483647, %v1489
    %v1522 = vand.u32 2147483647, %v1490
    %v1523 = vand.u32 2147483647, %v1491
    %v1524 = vand.u32 2147483647, %v1492
    %v1525 = vand.u32 2147483647, %v1493
    %v1526 = vand.u32 2147483647, %v1494
    %v1527 = vand.u32 2147483647, %v1495
    %v1528 = vand.u32 2147483647, %v1496
    %v1529 = vand.u32 2147483647, %v1497
    %v1530 = vand.u32 2147483647, %v1498
    %v1531 = vand.u32 2147483647, %v1499
    %v1532 = vand.u32 2147483647, %v1500
    %v1533 = vand.u32 2147483647, %v1501
    %v1534 = vand.u32 2147483647, %v1502
    %v1535 = vand.u32 2147483647, %v1503
    %v1536 = vand.u32 2147483647, %v1504
    %v1537 = vand.u32 2147483647, %v1505
    %v1538 = vand.u32 2147483647, %v1506
    %v1539 = vand.u32 2147483647, %v1507
    %v1540 = vand.u32 2147483647, %v1508
    %v1541 = vand.u32 2147483647, %v1509
    %v1542 = vand.u32 2147483647, %v1510
    %v1543 = vand.u32 2147483647, %v1511
    %v1544 = vand.u32 2147483647, %v1512
    %v1545 = vand.u32 2147483647, %v1513
    %v1546 = vand.u32 2147483647, %v1514
    %v1547 = vand.u32 2147483647, %v1515
    %v1548 = vand.u32 2147483647, %v1516
    %v1549 = vand.u32 2147483647, %v1517
    %v1550 = vand.u32 2147483647, %v1518
    %v1551 = vand.u32 2147483647, %v1519
    %v1552 = vadd.f32 %v1520, 1.0
    %v1553 = vadd.f32 %v1521, 1.0
    %v1554 = vadd.f32 %v1522, 1.0
    %v1555 = vadd.f32 %v1523, 1.0
    %v1556 = vadd.f32 %v1524, 1.0
    %v1557 = vadd.f32 %v1525, 1.0
    %v1558 = vadd.f32 %v1526, 1.0
    %v1559 = vadd.f32 %v1527, 1.0
    %v1560 = vadd.f32 %v1528, 1.0
    %v1561 = vadd.f32 %v1529, 1.0
    %v1562 = vadd.f32 %v1530, 1.0
    %v1563 = vadd.f32 %v1531, 1.0
    %v1564 = vadd.f32 %v1532, 1.0
    %v1565 = vadd.f32 %v1533, 1.0
    %v1566 = vadd.f32 %v1534, 1.0
    %v1567 = vadd.f32 %v1535, 1.0
    %v1568 = vadd.f32 %v1536, 1.0
    %v1569 = vadd.f32 %v1537, 1.0
    %v1570 = vadd.f32 %v1538, 1.0
    %v1571 = vadd.f32 %v1539, 1.0
    %v1572 = vadd.f32 %v1540, 1.0
    %v1573 = vadd.f32 %v1541, 1.0
    %v1574 = vadd.f32 %v1542, 1.0
    %v1575 = vadd.f32 %v1543, 1.0
    %v1576 = vadd.f32 %v1544, 1.0
    %v1577 = vadd.f32 %v1545, 1.0
    %v1578 = vadd.f32 %v1546, 1.0
    %v1579 = vadd.f32 %v1547, 1.0
    %v1580 = vadd.f32 %v1548, 1.0
    %v1581 = vadd.f32 %v1549, 1.0
    %v1582 = vadd.f32 %v1550, 1.0
    %v1583 = vadd.f32 %v1551, 1.0
    %v1584 = vlog2.pop %v1552
    %v1585 = vmul.f32 %v1584, 0.6931472
    %v1586 = vlog2.pop %v1553
    %v1587 = vmul.f32 %v1586, 0.6931472
    %v1588 = vlog2.pop %v1554
    %v1589 = vmul.f32 %v1588, 0.6931472
    %v1590 = vlog2.pop %v1555
    %v1591 = vmul.f32 %v1590, 0.6931472
    %v1592 = vlog2.pop %v1556
    %v1593 = vmul.f32 %v1592, 0.6931472
    %v1594 = vlog2.pop %v1557
    %v1595 = vmul.f32 %v1594, 0.6931472
    %v1596 = vlog2.pop %v1558
    %v1597 = vmul.f32 %v1596, 0.6931472
    %v1598 = vlog2.pop %v1559
    %v1599 = vmul.f32 %v1598, 0.6931472
    %v1600 = vlog2.pop %v1560
    %v1601 = vmul.f32 %v1600, 0.6931472
    %v1602 = vlog2.pop %v1561
    %v1603 = vmul.f32 %v1602, 0.6931472
    %v1604 = vlog2.pop %v1562
    %v1605 = vmul.f32 %v1604, 0.6931472
    %v1606 = vlog2.pop %v1563
    %v1607 = vmul.f32 %v1606, 0.6931472
    %v1608 = vlog2.pop %v1564
    %v1609 = vmul.f32 %v1608, 0.6931472
    %v1610 = vlog2.pop %v1565
    %v1611 = vmul.f32 %v1610, 0.6931472
    %v1612 = vlog2.pop %v1566
    %v1613 = vmul.f32 %v1612, 0.6931472
    %v1614 = vlog2.pop %v1567
    %v1615 = vmul.f32 %v1614, 0.6931472
    %v1616 = vlog2.pop %v1568
    %v1617 = vmul.f32 %v1616, 0.6931472
    %v1618 = vlog2.pop %v1569
    %v1619 = vmul.f32 %v1618, 0.6931472
    %v1620 = vlog2.pop %v1570
    %v1621 = vmul.f32 %v1620, 0.6931472
    %v1622 = vlog2.pop %v1571
    %v1623 = vmul.f32 %v1622, 0.6931472
    %v1624 = vlog2.pop %v1572
    %v1625 = vmul.f32 %v1624, 0.6931472
    %v1626 = vlog2.pop %v1573
    %v1627 = vmul.f32 %v1626, 0.6931472
    %v1628 = vlog2.pop %v1574
    %v1629 = vmul.f32 %v1628, 0.6931472
    %v1630 = vlog2.pop %v1575
    %v1631 = vmul.f32 %v1630, 0.6931472
    %v1632 = vlog2.pop %v1576
    %v1633 = vmul.f32 %v1632, 0.6931472
    %v1634 = vlog2.pop %v1577
    %v1635 = vmul.f32 %v1634, 0.6931472
    %v1636 = vlog2.pop %v1578
    %v1637 = vmul.f32 %v1636, 0.6931472
    %v1638 = vlog2.pop %v1579
    %v1639 = vmul.f32 %v1638, 0.6931472
    %v1640 = vlog2.pop %v1580
    %v1641 = vmul.f32 %v1640, 0.6931472
    %v1642 = vlog2.pop %v1581
    %v1643 = vmul.f32 %v1642, 0.6931472
    %v1644 = vlog2.pop %v1582
    %v1645 = vmul.f32 %v1644, 0.6931472
    %v1646 = vlog2.pop %v1583
    %v1647 = vmul.f32 %v1646, 0.6931472
    %v1648 = vsel %vm351, %v1585, 0.0
    %1649 = vadd.xlane.f32.xlu0 %v1648
    %v1650 = vpop.xlane.xlu0 %1649
    %v1651 = vsel %vm351, %v1587, 0.0
    %1652 = vadd.xlane.f32.xlu0 %v1651
    %v1653 = vpop.xlane.xlu0 %1652
    %v1654 = vsel %vm351, %v1589, 0.0
    %1655 = vadd.xlane.f32.xlu0 %v1654
    %v1656 = vpop.xlane.xlu0 %1655
    %v1657 = vsel %vm351, %v1591, 0.0
    %1658 = vadd.xlane.f32.xlu0 %v1657
    %v1659 = vpop.xlane.xlu0 %1658
    %v1660 = vsel %vm351, %v1593, 0.0
    %1661 = vadd.xlane.f32.xlu0 %v1660
    %v1662 = vpop.xlane.xlu0 %1661
    %v1663 = vsel %vm351, %v1595, 0.0
    %1664 = vadd.xlane.f32.xlu0 %v1663
    %v1665 = vpop.xlane.xlu0 %1664
    %v1666 = vsel %vm351, %v1597, 0.0
    %1667 = vadd.xlane.f32.xlu0 %v1666
    %v1668 = vpop.xlane.xlu0 %1667
    %v1669 = vsel %vm351, %v1599, 0.0
    %1670 = vadd.xlane.f32.xlu0 %v1669
    %v1671 = vpop.xlane.xlu0 %1670
    %v1672 = vsel %vm351, %v1601, 0.0
    %1673 = vadd.xlane.f32.xlu0 %v1672
    %v1674 = vpop.xlane.xlu0 %1673
    %v1675 = vsel %vm351, %v1603, 0.0
    %1676 = vadd.xlane.f32.xlu0 %v1675
    %v1677 = vpop.xlane.xlu0 %1676
    %v1678 = vsel %vm351, %v1605, 0.0
    %1679 = vadd.xlane.f32.xlu0 %v1678
    %v1680 = vpop.xlane.xlu0 %1679
    %v1681 = vsel %vm351, %v1607, 0.0
    %1682 = vadd.xlane.f32.xlu0 %v1681
    %v1683 = vpop.xlane.xlu0 %1682
    %v1684 = vsel %vm351, %v1609, 0.0
    %1685 = vadd.xlane.f32.xlu0 %v1684
    %v1686 = vpop.xlane.xlu0 %1685
    %v1687 = vsel %vm351, %v1611, 0.0
    %1688 = vadd.xlane.f32.xlu0 %v1687
    %v1689 = vpop.xlane.xlu0 %1688
    %v1690 = vsel %vm351, %v1613, 0.0
    %1691 = vadd.xlane.f32.xlu0 %v1690
    %v1692 = vpop.xlane.xlu0 %1691
    %v1693 = vsel %vm351, %v1615, 0.0
    %1694 = vadd.xlane.f32.xlu0 %v1693
    %v1695 = vpop.xlane.xlu0 %1694
    %v1696 = vsel %vm351, %v1617, 0.0
    %1697 = vadd.xlane.f32.xlu0 %v1696
    %v1698 = vpop.xlane.xlu0 %1697
    %v1699 = vsel %vm351, %v1619, 0.0
    %1700 = vadd.xlane.f32.xlu0 %v1699
    %v1701 = vpop.xlane.xlu0 %1700
    %v1702 = vsel %vm351, %v1621, 0.0
    %1703 = vadd.xlane.f32.xlu0 %v1702
    %v1704 = vpop.xlane.xlu0 %1703
    %v1705 = vsel %vm351, %v1623, 0.0
    %1706 = vadd.xlane.f32.xlu0 %v1705
    %v1707 = vpop.xlane.xlu0 %1706
    %v1708 = vsel %vm351, %v1625, 0.0
    %1709 = vadd.xlane.f32.xlu0 %v1708
    %v1710 = vpop.xlane.xlu0 %1709
    %v1711 = vsel %vm351, %v1627, 0.0
    %1712 = vadd.xlane.f32.xlu0 %v1711
    %v1713 = vpop.xlane.xlu0 %1712
    %v1714 = vsel %vm351, %v1629, 0.0
    %1715 = vadd.xlane.f32.xlu0 %v1714
    %v1716 = vpop.xlane.xlu0 %1715
    %v1717 = vsel %vm351, %v1631, 0.0
    %1718 = vadd.xlane.f32.xlu0 %v1717
    %v1719 = vpop.xlane.xlu0 %1718
    %v1720 = vsel %vm351, %v1633, 0.0
    %1721 = vadd.xlane.f32.xlu0 %v1720
    %v1722 = vpop.xlane.xlu0 %1721
    %v1723 = vsel %vm351, %v1635, 0.0
    %1724 = vadd.xlane.f32.xlu0 %v1723
    %v1725 = vpop.xlane.xlu0 %1724
    %v1726 = vsel %vm351, %v1637, 0.0
    %1727 = vadd.xlane.f32.xlu0 %v1726
    %v1728 = vpop.xlane.xlu0 %1727
    %v1729 = vsel %vm351, %v1639, 0.0
    %1730 = vadd.xlane.f32.xlu0 %v1729
    %v1731 = vpop.xlane.xlu0 %1730
    %v1732 = vsel %vm351, %v1641, 0.0
    %1733 = vadd.xlane.f32.xlu0 %v1732
    %v1734 = vpop.xlane.xlu0 %1733
    %v1735 = vsel %vm351, %v1643, 0.0
    %1736 = vadd.xlane.f32.xlu0 %v1735
    %v1737 = vpop.xlane.xlu0 %1736
    %v1738 = vsel %vm351, %v1645, 0.0
    %1739 = vadd.xlane.f32.xlu0 %v1738
    %v1740 = vpop.xlane.xlu0 %1739
    %v1741 = vsel %vm351, %v1647, 0.0
    %1742 = vadd.xlane.f32.xlu0 %v1741
    %v1743 = vpop.xlane.xlu0 %1742
    %v1744 = vmul.f32 %v1650, 0.03125
    %v1745 = vmul.f32 %v1653, 0.03125
    %v1746 = vmul.f32 %v1656, 0.03125
    %v1747 = vmul.f32 %v1659, 0.03125
    %v1748 = vmul.f32 %v1662, 0.03125
    %v1749 = vmul.f32 %v1665, 0.03125
    %v1750 = vmul.f32 %v1668, 0.03125
    %v1751 = vmul.f32 %v1671, 0.03125
    %v1752 = vmul.f32 %v1674, 0.03125
    %v1753 = vmul.f32 %v1677, 0.03125
    %v1754 = vmul.f32 %v1680, 0.03125
    %v1755 = vmul.f32 %v1683, 0.03125
    %v1756 = vmul.f32 %v1686, 0.03125
    %v1757 = vmul.f32 %v1689, 0.03125
    %v1758 = vmul.f32 %v1692, 0.03125
    %v1759 = vmul.f32 %v1695, 0.03125
    %v1760 = vmul.f32 %v1698, 0.03125
    %v1761 = vmul.f32 %v1701, 0.03125
    %v1762 = vmul.f32 %v1704, 0.03125
    %v1763 = vmul.f32 %v1707, 0.03125
    %v1764 = vmul.f32 %v1710, 0.03125
    %v1765 = vmul.f32 %v1713, 0.03125
    %v1766 = vmul.f32 %v1716, 0.03125
    %v1767 = vmul.f32 %v1719, 0.03125
    %v1768 = vmul.f32 %v1722, 0.03125
    %v1769 = vmul.f32 %v1725, 0.03125
    %v1770 = vmul.f32 %v1728, 0.03125
    %v1771 = vmul.f32 %v1731, 0.03125
    %v1772 = vmul.f32 %v1734, 0.03125
    %v1773 = vmul.f32 %v1737, 0.03125
    %v1774 = vmul.f32 %v1740, 0.03125
    %v1775 = vmul.f32 %v1743, 0.03125
    %1776 = vst.msk [vmem:[#allocation5] sm:$0xff] %vm351, %v1455
    %v1809 = vperm.slane %v1744, %v1179
    %v1810 = vperm.slane %v1745, %v1181
    %v1811 = vsel %vm1183, %v1810, %v1809
    %v1812 = vperm.slane %v1746, %v1185
    %v1813 = vsel %vm1187, %v1812, %v1811
    %v1814 = vperm.slane %v1747, %v1189
    %v1815 = vsel %vm1191, %v1814, %v1813
    %v1816 = vperm.slane %v1748, %v1179
    %v1817 = vperm.slane %v1749, %v1181
    %v1818 = vsel %vm1183, %v1817, %v1816
    %v1819 = vperm.slane %v1750, %v1185
    %v1820 = vsel %vm1187, %v1819, %v1818
    %v1821 = vperm.slane %v1751, %v1189
    %v1822 = vsel %vm1191, %v1821, %v1820
    %v1823 = vperm.slane %v1752, %v1179
    %v1824 = vperm.slane %v1753, %v1181
    %v1825 = vsel %vm1183, %v1824, %v1823
    %v1826 = vperm.slane %v1754, %v1185
    %v1827 = vsel %vm1187, %v1826, %v1825
    %v1828 = vperm.slane %v1755, %v1189
    %v1829 = vsel %vm1191, %v1828, %v1827
    %v1830 = vperm.slane %v1756, %v1179
    %v1831 = vperm.slane %v1757, %v1181
    %v1832 = vsel %vm1183, %v1831, %v1830
    %v1833 = vperm.slane %v1758, %v1185
    %v1834 = vsel %vm1187, %v1833, %v1832
    %v1835 = vperm.slane %v1759, %v1189
    %v1836 = vsel %vm1191, %v1835, %v1834
    %v1837 = vperm.slane %v1760, %v1179
    %v1838 = vperm.slane %v1761, %v1181
    %v1839 = vsel %vm1183, %v1838, %v1837
    %v1840 = vperm.slane %v1762, %v1185
    %v1841 = vsel %vm1187, %v1840, %v1839
    %v1842 = vperm.slane %v1763, %v1189
    %v1843 = vsel %vm1191, %v1842, %v1841
    %v1844 = vperm.slane %v1764, %v1179
    %v1845 = vperm.slane %v1765, %v1181
    %v1846 = vsel %vm1183, %v1845, %v1844
    %v1847 = vperm.slane %v1766, %v1185
    %v1848 = vsel %vm1187, %v1847, %v1846
    %v1849 = vperm.slane %v1767, %v1189
    %v1850 = vsel %vm1191, %v1849, %v1848
    %v1851 = vperm.slane %v1768, %v1179
    %v1852 = vperm.slane %v1769, %v1181
    %v1853 = vsel %vm1183, %v1852, %v1851
    %v1854 = vperm.slane %v1770, %v1185
    %v1855 = vsel %vm1187, %v1854, %v1853
    %v1856 = vperm.slane %v1771, %v1189
    %v1857 = vsel %vm1191, %v1856, %v1855
    %v1858 = vperm.slane %v1772, %v1179
    %v1859 = vperm.slane %v1773, %v1181
    %v1860 = vsel %vm1183, %v1859, %v1858
    %v1861 = vperm.slane %v1774, %v1185
    %v1862 = vsel %vm1187, %v1861, %v1860
    %v1863 = vperm.slane %v1775, %v1189
    %v1864 = vsel %vm1191, %v1863, %v1862
    %v1865 = vsel %vm1242, %v1822, %v1815
    %v1866 = vsel %vm1244, %v1829, %v1865
    %v1867 = vsel %vm1246, %v1836, %v1866
    %v1868 = vsel %vm1248, %v1843, %v1867
    %v1869 = vsel %vm1250, %v1850, %v1868
    %v1870 = vsel %vm1252, %v1857, %v1869
    %v1871 = vsel %vm1254, %v1864, %v1870
    %1873 = vst.msk [vmem:[#allocation6] sm:$0xff] %vm351, %v1871
    // Predicated region
    $region30: #{tpu_custom_call.1} parent=1 // pred_check
      _
    $region31: #{tpu_custom_call.1} parent=1 // pred_check_branch
      %1875 = sbr.rel (0) target = $region33
    $region32: #{tpu_custom_call.1} parent=1 // pred_region
      %1877 = vsyncadd [#allocation4], 0
      %s1879 = sshll.u32 [#allocation5], 4
      %s1880 = int_to_ptr.vmem [resolvable:$true] %s1879
      %s1881 = sshll.u32 %s6, 4
      %s1882 = int_to_ptr.hbm [resolvable:$true] %s1881
      %1884 = dma.vmem_to_hbm [thread:$0]  %s1880, 128, %s1882, [#allocation4]
    $region33: #{tpu_custom_call.1} parent=1 // pred_fallthru
      _
    // Predicated region
    $region34: #{tpu_custom_call.1} parent=1 // pred_check
      _
    $region35: #{tpu_custom_call.1} parent=1 // pred_check_branch
      %1886 = sbr.rel (0) target = $region37
    $region36: #{tpu_custom_call.1} parent=1 // pred_region
      %1888 = vsyncadd [#allocation7], 0
      %s1890 = sshll.u32 [#allocation6], 4
      %s1891 = int_to_ptr.vmem [resolvable:$true] %s1890
      %s1892 = sshll.u32 %s7, 4
      %s1893 = int_to_ptr.hbm [resolvable:$true] %s1892
      %1895 = dma.vmem_to_hbm [thread:$0]  %s1891, 128, %s1893, [#allocation7]
    $region37: #{tpu_custom_call.1} parent=1 // pred_fallthru
      _
    // Predicated region
    $region38: #{tpu_custom_call.1} parent=1 // pred_check
      _
    $region39: #{tpu_custom_call.1} parent=1 // pred_check_branch
      %1897 = sbr.rel (0) target = $region41
    $region40: #{tpu_custom_call.1} parent=1 // pred_region
      %1899 = dma.done [#allocation4], 128
    $region41: #{tpu_custom_call.1} parent=1 // pred_fallthru
      _
    // Predicated region
    $region42: #{tpu_custom_call.1} parent=1 // pred_check
      _
    $region43: #{tpu_custom_call.1} parent=1 // pred_check_branch
      %1901 = sbr.rel (0) target = $region45
    $region44: #{tpu_custom_call.1} parent=1 // pred_region
      %1903 = dma.done [#allocation7], 128
    $region45: #{tpu_custom_call.1} parent=1 // pred_fallthru
      _
    %1904 = vsyncpa [#allocation3], 1
    %1905 = vsyncpa [#allocation4], 1
    %1906 = vsyncpa [#allocation7], 1

</llo_original>
